<compile_context>
chip_gen: v7x
topology: tpu7x:2x2x1
jax: 0.10.0
libtpu: 0.0.40
codegen_flags: <defaults>
</compile_context>

<pallas_src>
import functools

import jax
import jax.numpy as jnp
from jax.experimental import pallas as pl
from jax.experimental.pallas import tpu as pltpu

H_N = 10
INPUT_N = 2
OUTPUT_N = 1
N_LAYERS = 11          # 10 hidden layers (Swish) + 1 output layer (linear)
HP = 16                # feature dim padded to a sublane multiple (>= H_N)


def _round_up(x, m):
    return -(-x // m) * m


def _swish(h):
    # x * sigmoid(x); exp and the (exact) reciprocal both use the EUP slot.
    return h * pl.reciprocal(1.0 + jnp.exp(-h), approx=False)


def _mlp_kernel(x_ref, w_ref, b_ref, o_ref):
    """Fused 11-layer MLP, feature-major.

    x_ref: (INPUT_N, tile_n)   real input feature rows only (no zero padding)
    w_ref: (N_LAYERS, HP, HP)  transposed + zero-padded weights (out, in)
    b_ref: (N_LAYERS, HP, 1)   zero-padded bias column vectors
    o_ref: (OUTPUT_N, tile_n)  lane-dense output block
    """
    # Layer 0: (HP, INPUT_N) x (INPUT_N, tile_n).  Padded weight rows / biases
    # are zero, so feature rows >= H_N come out as exactly 0 (Swish(0)=0).
    h = jnp.dot(w_ref[0][:, :INPUT_N], x_ref[...],
                preferred_element_type=jnp.float32) + b_ref[0]
    h = _swish(h)

    # Hidden layers 1..9: (HP, HP) x (HP, tile_n) on the MXU.
    for i in range(1, N_LAYERS - 1):
        h = jnp.dot(w_ref[i], h, preferred_element_type=jnp.float32) + b_ref[i]
        h = _swish(h)

    # Final layer: only the real output row -> (OUTPUT_N, tile_n), stored
    # directly (lane-dense, no sublane slice before the store).
    out = jnp.dot(w_ref[N_LAYERS - 1][:OUTPUT_N, :], h,
                  preferred_element_type=jnp.float32)
    out = out + b_ref[N_LAYERS - 1][:OUTPUT_N, :]
    o_ref[...] = out.astype(o_ref.dtype)


def _pack_params(params):
    """Pack [w0, b0, ..., w10, b10] into zero-padded slabs.

    w_i: (in, out)  -> W[i, :out, :in] = w_i.T   (so the kernel does W_T @ h)
    b_i: (1, out)   -> B[i, :out, 0]   = b_i
    """
    W = jnp.zeros((N_LAYERS, HP, HP), jnp.float32)
    B = jnp.zeros((N_LAYERS, HP, 1), jnp.float32)
    for i in range(N_LAYERS):
        w = params[2 * i].astype(jnp.float32)        # (in, out)
        b = params[2 * i + 1].astype(jnp.float32)    # (1, out)
        in_f, out_f = w.shape
        W = W.at[i, :out_f, :in_f].set(w.T)
        B = B.at[i, :out_f, 0].set(b[0])
    return W, B


@functools.partial(jax.jit, static_argnames=("tile_n",))
def pinn_t_forward(x, params, *, tile_n=4096):
    """x: (N, INPUT_N).  params: flat list [w0, b0, ..., w10, b10]."""
    assert tile_n % 128 == 0, "tile_n must be a multiple of 128 (lane width)"
    n = x.shape[0]

    # Clamp the lane tile so the grid has >= 2 steps whenever the batch allows
    # (v7x has two TensorCores; 'parallel' shards grid steps across them).
    tile_n = min(tile_n, max(128, _round_up(-(-n // 2), 128)))
    n_pad = _round_up(n, tile_n)
    n_steps = n_pad // tile_n

    # Feature-major input with NO feature-dim padding: only the 2 real rows
    # are materialized and DMA'd.
    xt = jnp.zeros((INPUT_N, n_pad), jnp.float32)
    xt = xt.at[:, :n].set(x.astype(jnp.float32).T)

    W, B = _pack_params(params)

    cost = pl.CostEstimate(
        flops=2 * N_LAYERS * HP * HP * n_pad,
        transcendentals=(N_LAYERS - 1) * HP * n_pad,
        bytes_accessed=4 * (INPUT_N * n_pad + OUTPUT_N * n_pad
                            + N_LAYERS * HP * (HP + 1)),
    )

    out = pl.pallas_call(
        _mlp_kernel,
        out_shape=jax.ShapeDtypeStruct((OUTPUT_N, n_pad), jnp.float32),
        grid_spec=pltpu.PrefetchScalarGridSpec(
            num_scalar_prefetch=0,
            grid=(n_steps,),
            in_specs=[
                pl.BlockSpec((INPUT_N, tile_n), lambda i: (0, i)),
                # Constant block index -> fetched once, stays VMEM-resident.
                pl.BlockSpec((N_LAYERS, HP, HP), lambda i: (0, 0, 0)),
                pl.BlockSpec((N_LAYERS, HP, 1), lambda i: (0, 0, 0)),
            ],
            out_specs=pl.BlockSpec((OUTPUT_N, tile_n), lambda i: (0, i)),
        ),
        compiler_params=pltpu.CompilerParams(
            dimension_semantics=("parallel",),
        ),
        cost_estimate=cost,
    )(xt, W, B)

    return out[:, :n].T                               # (N, OUTPUT_N) float32


def init_params(key):
    """Deterministic init mimicking nn.Linear default (U[-1/sqrt(fan_in), +])."""
    dims = [INPUT_N] + [H_N] * 10 + [OUTPUT_N]
    params = []
    for i in range(N_LAYERS):
        fan_in, fan_out = dims[i], dims[i + 1]
        key, kw, kb = jax.random.split(key, 3)
        bound = 1.0 / (fan_in ** 0.5)
        w = jax.random.uniform(kw, (fan_in, fan_out), jnp.float32, -bound, bound)
        b = jax.random.uniform(kb, (1, fan_out), jnp.float32, -bound, bound)
        params.append(w)
        params.append(b)
    return params


def _reference_forward(x, params):
    h = x
    n_layers = len(params) // 2
    for i in range(n_layers):
        h = h @ params[2 * i] + params[2 * i + 1]
        if i < n_layers - 1:
            h = h * jax.nn.sigmoid(h)
    return h


if __name__ == "__main__":
    key = jax.random.PRNGKey(0)
    key, kx = jax.random.split(key)

    batch = 600  # non-multiple of 128 -> exercises padding + 2-step grid
    x = jax.random.normal(kx, (batch, INPUT_N), jnp.float32)
    params = init_params(key)

    out = pinn_t_forward(x, params)
    out = jax.block_until_ready(out)

    ref = _reference_forward(x, params)
    assert out.shape == (batch, OUTPUT_N), out.shape
    assert jnp.allclose(out, ref, atol=1e-5, rtol=1e-5), (
        float(jnp.max(jnp.abs(out - ref))))

    print("KERNEL_OK")
</pallas_src>

<mosaic_0001>
module attributes {stable_mosaic.version = 11 : i64} {
  func.func @_mlp_kernel(%arg0: i32, %arg1: memref<2x384xf32, #tpu.memory_space<vmem>>, %arg2: memref<11x16x16xf32, #tpu.memory_space<vmem>>, %arg3: memref<11x16x1xf32, #tpu.memory_space<vmem>>, %arg4: memref<1x384xf32, #tpu.memory_space<vmem>>) attributes {dimension_semantics = [#tpu.dimension_semantics<parallel>], iteration_bounds = array<i64: 2>, scalar_prefetch = 0 : i64, scratch_operands = 0 : i64, tpu.core_type = #tpu.core_type<tc>, window_params = [{transform_indices = @transform_0, window_bounds = array<i64: 2, 384>}, {pipeline_mode = #tpu.pipeline_mode<synchronous>, transform_indices = @transform_1, window_bounds = array<i64: 11, 16, 16>}, {pipeline_mode = #tpu.pipeline_mode<synchronous>, transform_indices = @transform_2, window_bounds = array<i64: 11, 16, 1>}, {transform_indices = @transform_3, window_bounds = array<i64: 1, 384>}]} {
    %c0 = arith.constant 0 : index
    %c0_0 = arith.constant 0 : index
    %c0_1 = arith.constant 0 : index
    %0 = vector.load %arg2[%c0, %c0_0, %c0_1] : memref<11x16x16xf32, #tpu.memory_space<vmem>>, vector<1x16x16xf32>
    %1 = vector.shape_cast %0 : vector<1x16x16xf32> to vector<16x16xf32>
    %2 = vector.extract_strided_slice %1 {offsets = [0, 0], sizes = [16, 2], strides = [1, 1]} : vector<16x16xf32> to vector<16x2xf32>
    %c0_2 = arith.constant 0 : index
    %c0_3 = arith.constant 0 : index
    %3 = vector.load %arg1[%c0_2, %c0_3] : memref<2x384xf32, #tpu.memory_space<vmem>>, vector<2x384xf32>
    %cst = arith.constant dense<0.000000e+00> : vector<16x384xf32>
    %4 = tpu.matmul %2, %3, %cst {dimension_numbers = #tpu.dot_dimension_numbers<[1], [0], [0], [1], [0, 0, 1, 1], [], []>} : vector<16x2xf32>, vector<2x384xf32>, vector<16x384xf32> -> vector<16x384xf32>
    %c0_4 = arith.constant 0 : index
    %c0_5 = arith.constant 0 : index
    %c0_6 = arith.constant 0 : index
    %5 = vector.load %arg3[%c0_4, %c0_5, %c0_6] : memref<11x16x1xf32, #tpu.memory_space<vmem>>, vector<1x16x1xf32>
    %6 = vector.shape_cast %5 : vector<1x16x1xf32> to vector<16x1xf32>
    %7 = vector.broadcast %6 : vector<16x1xf32> to vector<16x384xf32>
    %8 = arith.addf %4, %7 : vector<16x384xf32>
    %cst_7 = arith.constant 0.000000e+00 : f32
    %9 = vector.broadcast %cst_7 : f32 to vector<16x384xf32>
    %10 = arith.subf %9, %8 : vector<16x384xf32>
    %11 = math.exp %10 : vector<16x384xf32>
    %cst_8 = arith.constant 1.000000e+00 : f32
    %12 = vector.broadcast %cst_8 : f32 to vector<16x384xf32>
    %13 = arith.addf %12, %11 : vector<16x384xf32>
    %14 = tpu.reciprocal %13 : vector<16x384xf32> -> vector<16x384xf32>
    %15 = arith.mulf %8, %14 : vector<16x384xf32>
    %c1 = arith.constant 1 : index
    %c0_9 = arith.constant 0 : index
    %c0_10 = arith.constant 0 : index
    %16 = vector.load %arg2[%c1, %c0_9, %c0_10] : memref<11x16x16xf32, #tpu.memory_space<vmem>>, vector<1x16x16xf32>
    %17 = vector.shape_cast %16 : vector<1x16x16xf32> to vector<16x16xf32>
    %cst_11 = arith.constant dense<0.000000e+00> : vector<16x384xf32>
    %18 = tpu.matmul %17, %15, %cst_11 {dimension_numbers = #tpu.dot_dimension_numbers<[1], [0], [0], [1], [0, 0, 1, 1], [], []>} : vector<16x16xf32>, vector<16x384xf32>, vector<16x384xf32> -> vector<16x384xf32>
    %c1_12 = arith.constant 1 : index
    %c0_13 = arith.constant 0 : index
    %c0_14 = arith.constant 0 : index
    %19 = vector.load %arg3[%c1_12, %c0_13, %c0_14] : memref<11x16x1xf32, #tpu.memory_space<vmem>>, vector<1x16x1xf32>
    %20 = vector.shape_cast %19 : vector<1x16x1xf32> to vector<16x1xf32>
    %21 = vector.broadcast %20 : vector<16x1xf32> to vector<16x384xf32>
    %22 = arith.addf %18, %21 : vector<16x384xf32>
    %cst_15 = arith.constant 0.000000e+00 : f32
    %23 = vector.broadcast %cst_15 : f32 to vector<16x384xf32>
    %24 = arith.subf %23, %22 : vector<16x384xf32>
    %25 = math.exp %24 : vector<16x384xf32>
    %cst_16 = arith.constant 1.000000e+00 : f32
    %26 = vector.broadcast %cst_16 : f32 to vector<16x384xf32>
    %27 = arith.addf %26, %25 : vector<16x384xf32>
    %28 = tpu.reciprocal %27 : vector<16x384xf32> -> vector<16x384xf32>
    %29 = arith.mulf %22, %28 : vector<16x384xf32>
    %c2 = arith.constant 2 : index
    %c0_17 = arith.constant 0 : index
    %c0_18 = arith.constant 0 : index
    %30 = vector.load %arg2[%c2, %c0_17, %c0_18] : memref<11x16x16xf32, #tpu.memory_space<vmem>>, vector<1x16x16xf32>
    %31 = vector.shape_cast %30 : vector<1x16x16xf32> to vector<16x16xf32>
    %cst_19 = arith.constant dense<0.000000e+00> : vector<16x384xf32>
    %32 = tpu.matmul %31, %29, %cst_19 {dimension_numbers = #tpu.dot_dimension_numbers<[1], [0], [0], [1], [0, 0, 1, 1], [], []>} : vector<16x16xf32>, vector<16x384xf32>, vector<16x384xf32> -> vector<16x384xf32>
    %c2_20 = arith.constant 2 : index
    %c0_21 = arith.constant 0 : index
    %c0_22 = arith.constant 0 : index
    %33 = vector.load %arg3[%c2_20, %c0_21, %c0_22] : memref<11x16x1xf32, #tpu.memory_space<vmem>>, vector<1x16x1xf32>
    %34 = vector.shape_cast %33 : vector<1x16x1xf32> to vector<16x1xf32>
    %35 = vector.broadcast %34 : vector<16x1xf32> to vector<16x384xf32>
    %36 = arith.addf %32, %35 : vector<16x384xf32>
    %cst_23 = arith.constant 0.000000e+00 : f32
    %37 = vector.broadcast %cst_23 : f32 to vector<16x384xf32>
    %38 = arith.subf %37, %36 : vector<16x384xf32>
    %39 = math.exp %38 : vector<16x384xf32>
    %cst_24 = arith.constant 1.000000e+00 : f32
    %40 = vector.broadcast %cst_24 : f32 to vector<16x384xf32>
    %41 = arith.addf %40, %39 : vector<16x384xf32>
    %42 = tpu.reciprocal %41 : vector<16x384xf32> -> vector<16x384xf32>
    %43 = arith.mulf %36, %42 : vector<16x384xf32>
    %c3 = arith.constant 3 : index
    %c0_25 = arith.constant 0 : index
    %c0_26 = arith.constant 0 : index
    %44 = vector.load %arg2[%c3, %c0_25, %c0_26] : memref<11x16x16xf32, #tpu.memory_space<vmem>>, vector<1x16x16xf32>
    %45 = vector.shape_cast %44 : vector<1x16x16xf32> to vector<16x16xf32>
    %cst_27 = arith.constant dense<0.000000e+00> : vector<16x384xf32>
    %46 = tpu.matmul %45, %43, %cst_27 {dimension_numbers = #tpu.dot_dimension_numbers<[1], [0], [0], [1], [0, 0, 1, 1], [], []>} : vector<16x16xf32>, vector<16x384xf32>, vector<16x384xf32> -> vector<16x384xf32>
    %c3_28 = arith.constant 3 : index
    %c0_29 = arith.constant 0 : index
    %c0_30 = arith.constant 0 : index
    %47 = vector.load %arg3[%c3_28, %c0_29, %c0_30] : memref<11x16x1xf32, #tpu.memory_space<vmem>>, vector<1x16x1xf32>
    %48 = vector.shape_cast %47 : vector<1x16x1xf32> to vector<16x1xf32>
    %49 = vector.broadcast %48 : vector<16x1xf32> to vector<16x384xf32>
    %50 = arith.addf %46, %49 : vector<16x384xf32>
    %cst_31 = arith.constant 0.000000e+00 : f32
    %51 = vector.broadcast %cst_31 : f32 to vector<16x384xf32>
    %52 = arith.subf %51, %50 : vector<16x384xf32>
    %53 = math.exp %52 : vector<16x384xf32>
    %cst_32 = arith.constant 1.000000e+00 : f32
    %54 = vector.broadcast %cst_32 : f32 to vector<16x384xf32>
    %55 = arith.addf %54, %53 : vector<16x384xf32>
    %56 = tpu.reciprocal %55 : vector<16x384xf32> -> vector<16x384xf32>
    %57 = arith.mulf %50, %56 : vector<16x384xf32>
    %c4 = arith.constant 4 : index
    %c0_33 = arith.constant 0 : index
    %c0_34 = arith.constant 0 : index
    %58 = vector.load %arg2[%c4, %c0_33, %c0_34] : memref<11x16x16xf32, #tpu.memory_space<vmem>>, vector<1x16x16xf32>
    %59 = vector.shape_cast %58 : vector<1x16x16xf32> to vector<16x16xf32>
    %cst_35 = arith.constant dense<0.000000e+00> : vector<16x384xf32>
    %60 = tpu.matmul %59, %57, %cst_35 {dimension_numbers = #tpu.dot_dimension_numbers<[1], [0], [0], [1], [0, 0, 1, 1], [], []>} : vector<16x16xf32>, vector<16x384xf32>, vector<16x384xf32> -> vector<16x384xf32>
    %c4_36 = arith.constant 4 : index
    %c0_37 = arith.constant 0 : index
    %c0_38 = arith.constant 0 : index
    %61 = vector.load %arg3[%c4_36, %c0_37, %c0_38] : memref<11x16x1xf32, #tpu.memory_space<vmem>>, vector<1x16x1xf32>
    %62 = vector.shape_cast %61 : vector<1x16x1xf32> to vector<16x1xf32>
    %63 = vector.broadcast %62 : vector<16x1xf32> to vector<16x384xf32>
    %64 = arith.addf %60, %63 : vector<16x384xf32>
    %cst_39 = arith.constant 0.000000e+00 : f32
    %65 = vector.broadcast %cst_39 : f32 to vector<16x384xf32>
    %66 = arith.subf %65, %64 : vector<16x384xf32>
    %67 = math.exp %66 : vector<16x384xf32>
    %cst_40 = arith.constant 1.000000e+00 : f32
    %68 = vector.broadcast %cst_40 : f32 to vector<16x384xf32>
    %69 = arith.addf %68, %67 : vector<16x384xf32>
    %70 = tpu.reciprocal %69 : vector<16x384xf32> -> vector<16x384xf32>
    %71 = arith.mulf %64, %70 : vector<16x384xf32>
    %c5 = arith.constant 5 : index
    %c0_41 = arith.constant 0 : index
    %c0_42 = arith.constant 0 : index
    %72 = vector.load %arg2[%c5, %c0_41, %c0_42] : memref<11x16x16xf32, #tpu.memory_space<vmem>>, vector<1x16x16xf32>
    %73 = vector.shape_cast %72 : vector<1x16x16xf32> to vector<16x16xf32>
    %cst_43 = arith.constant dense<0.000000e+00> : vector<16x384xf32>
    %74 = tpu.matmul %73, %71, %cst_43 {dimension_numbers = #tpu.dot_dimension_numbers<[1], [0], [0], [1], [0, 0, 1, 1], [], []>} : vector<16x16xf32>, vector<16x384xf32>, vector<16x384xf32> -> vector<16x384xf32>
    %c5_44 = arith.constant 5 : index
    %c0_45 = arith.constant 0 : index
    %c0_46 = arith.constant 0 : index
    %75 = vector.load %arg3[%c5_44, %c0_45, %c0_46] : memref<11x16x1xf32, #tpu.memory_space<vmem>>, vector<1x16x1xf32>
    %76 = vector.shape_cast %75 : vector<1x16x1xf32> to vector<16x1xf32>
    %77 = vector.broadcast %76 : vector<16x1xf32> to vector<16x384xf32>
    %78 = arith.addf %74, %77 : vector<16x384xf32>
    %cst_47 = arith.constant 0.000000e+00 : f32
    %79 = vector.broadcast %cst_47 : f32 to vector<16x384xf32>
    %80 = arith.subf %79, %78 : vector<16x384xf32>
    %81 = math.exp %80 : vector<16x384xf32>
    %cst_48 = arith.constant 1.000000e+00 : f32
    %82 = vector.broadcast %cst_48 : f32 to vector<16x384xf32>
    %83 = arith.addf %82, %81 : vector<16x384xf32>
    %84 = tpu.reciprocal %83 : vector<16x384xf32> -> vector<16x384xf32>
    %85 = arith.mulf %78, %84 : vector<16x384xf32>
    %c6 = arith.constant 6 : index
    %c0_49 = arith.constant 0 : index
    %c0_50 = arith.constant 0 : index
    %86 = vector.load %arg2[%c6, %c0_49, %c0_50] : memref<11x16x16xf32, #tpu.memory_space<vmem>>, vector<1x16x16xf32>
    %87 = vector.shape_cast %86 : vector<1x16x16xf32> to vector<16x16xf32>
    %cst_51 = arith.constant dense<0.000000e+00> : vector<16x384xf32>
    %88 = tpu.matmul %87, %85, %cst_51 {dimension_numbers = #tpu.dot_dimension_numbers<[1], [0], [0], [1], [0, 0, 1, 1], [], []>} : vector<16x16xf32>, vector<16x384xf32>, vector<16x384xf32> -> vector<16x384xf32>
    %c6_52 = arith.constant 6 : index
    %c0_53 = arith.constant 0 : index
    %c0_54 = arith.constant 0 : index
    %89 = vector.load %arg3[%c6_52, %c0_53, %c0_54] : memref<11x16x1xf32, #tpu.memory_space<vmem>>, vector<1x16x1xf32>
    %90 = vector.shape_cast %89 : vector<1x16x1xf32> to vector<16x1xf32>
    %91 = vector.broadcast %90 : vector<16x1xf32> to vector<16x384xf32>
    %92 = arith.addf %88, %91 : vector<16x384xf32>
    %cst_55 = arith.constant 0.000000e+00 : f32
    %93 = vector.broadcast %cst_55 : f32 to vector<16x384xf32>
    %94 = arith.subf %93, %92 : vector<16x384xf32>
    %95 = math.exp %94 : vector<16x384xf32>
    %cst_56 = arith.constant 1.000000e+00 : f32
    %96 = vector.broadcast %cst_56 : f32 to vector<16x384xf32>
    %97 = arith.addf %96, %95 : vector<16x384xf32>
    %98 = tpu.reciprocal %97 : vector<16x384xf32> -> vector<16x384xf32>
    %99 = arith.mulf %92, %98 : vector<16x384xf32>
    %c7 = arith.constant 7 : index
    %c0_57 = arith.constant 0 : index
    %c0_58 = arith.constant 0 : index
    %100 = vector.load %arg2[%c7, %c0_57, %c0_58] : memref<11x16x16xf32, #tpu.memory_space<vmem>>, vector<1x16x16xf32>
    %101 = vector.shape_cast %100 : vector<1x16x16xf32> to vector<16x16xf32>
    %cst_59 = arith.constant dense<0.000000e+00> : vector<16x384xf32>
    %102 = tpu.matmul %101, %99, %cst_59 {dimension_numbers = #tpu.dot_dimension_numbers<[1], [0], [0], [1], [0, 0, 1, 1], [], []>} : vector<16x16xf32>, vector<16x384xf32>, vector<16x384xf32> -> vector<16x384xf32>
    %c7_60 = arith.constant 7 : index
    %c0_61 = arith.constant 0 : index
    %c0_62 = arith.constant 0 : index
    %103 = vector.load %arg3[%c7_60, %c0_61, %c0_62] : memref<11x16x1xf32, #tpu.memory_space<vmem>>, vector<1x16x1xf32>
    %104 = vector.shape_cast %103 : vector<1x16x1xf32> to vector<16x1xf32>
    %105 = vector.broadcast %104 : vector<16x1xf32> to vector<16x384xf32>
    %106 = arith.addf %102, %105 : vector<16x384xf32>
    %cst_63 = arith.constant 0.000000e+00 : f32
    %107 = vector.broadcast %cst_63 : f32 to vector<16x384xf32>
    %108 = arith.subf %107, %106 : vector<16x384xf32>
    %109 = math.exp %108 : vector<16x384xf32>
    %cst_64 = arith.constant 1.000000e+00 : f32
    %110 = vector.broadcast %cst_64 : f32 to vector<16x384xf32>
    %111 = arith.addf %110, %109 : vector<16x384xf32>
    %112 = tpu.reciprocal %111 : vector<16x384xf32> -> vector<16x384xf32>
    %113 = arith.mulf %106, %112 : vector<16x384xf32>
    %c8 = arith.constant 8 : index
    %c0_65 = arith.constant 0 : index
    %c0_66 = arith.constant 0 : index
    %114 = vector.load %arg2[%c8, %c0_65, %c0_66] : memref<11x16x16xf32, #tpu.memory_space<vmem>>, vector<1x16x16xf32>
    %115 = vector.shape_cast %114 : vector<1x16x16xf32> to vector<16x16xf32>
    %cst_67 = arith.constant dense<0.000000e+00> : vector<16x384xf32>
    %116 = tpu.matmul %115, %113, %cst_67 {dimension_numbers = #tpu.dot_dimension_numbers<[1], [0], [0], [1], [0, 0, 1, 1], [], []>} : vector<16x16xf32>, vector<16x384xf32>, vector<16x384xf32> -> vector<16x384xf32>
    %c8_68 = arith.constant 8 : index
    %c0_69 = arith.constant 0 : index
    %c0_70 = arith.constant 0 : index
    %117 = vector.load %arg3[%c8_68, %c0_69, %c0_70] : memref<11x16x1xf32, #tpu.memory_space<vmem>>, vector<1x16x1xf32>
    %118 = vector.shape_cast %117 : vector<1x16x1xf32> to vector<16x1xf32>
    %119 = vector.broadcast %118 : vector<16x1xf32> to vector<16x384xf32>
    %120 = arith.addf %116, %119 : vector<16x384xf32>
    %cst_71 = arith.constant 0.000000e+00 : f32
    %121 = vector.broadcast %cst_71 : f32 to vector<16x384xf32>
    %122 = arith.subf %121, %120 : vector<16x384xf32>
    %123 = math.exp %122 : vector<16x384xf32>
    %cst_72 = arith.constant 1.000000e+00 : f32
    %124 = vector.broadcast %cst_72 : f32 to vector<16x384xf32>
    %125 = arith.addf %124, %123 : vector<16x384xf32>
    %126 = tpu.reciprocal %125 : vector<16x384xf32> -> vector<16x384xf32>
    %127 = arith.mulf %120, %126 : vector<16x384xf32>
    %c9 = arith.constant 9 : index
    %c0_73 = arith.constant 0 : index
    %c0_74 = arith.constant 0 : index
    %128 = vector.load %arg2[%c9, %c0_73, %c0_74] : memref<11x16x16xf32, #tpu.memory_space<vmem>>, vector<1x16x16xf32>
    %129 = vector.shape_cast %128 : vector<1x16x16xf32> to vector<16x16xf32>
    %cst_75 = arith.constant dense<0.000000e+00> : vector<16x384xf32>
    %130 = tpu.matmul %129, %127, %cst_75 {dimension_numbers = #tpu.dot_dimension_numbers<[1], [0], [0], [1], [0, 0, 1, 1], [], []>} : vector<16x16xf32>, vector<16x384xf32>, vector<16x384xf32> -> vector<16x384xf32>
    %c9_76 = arith.constant 9 : index
    %c0_77 = arith.constant 0 : index
    %c0_78 = arith.constant 0 : index
    %131 = vector.load %arg3[%c9_76, %c0_77, %c0_78] : memref<11x16x1xf32, #tpu.memory_space<vmem>>, vector<1x16x1xf32>
    %132 = vector.shape_cast %131 : vector<1x16x1xf32> to vector<16x1xf32>
    %133 = vector.broadcast %132 : vector<16x1xf32> to vector<16x384xf32>
    %134 = arith.addf %130, %133 : vector<16x384xf32>
    %cst_79 = arith.constant 0.000000e+00 : f32
    %135 = vector.broadcast %cst_79 : f32 to vector<16x384xf32>
    %136 = arith.subf %135, %134 : vector<16x384xf32>
    %137 = math.exp %136 : vector<16x384xf32>
    %cst_80 = arith.constant 1.000000e+00 : f32
    %138 = vector.broadcast %cst_80 : f32 to vector<16x384xf32>
    %139 = arith.addf %138, %137 : vector<16x384xf32>
    %140 = tpu.reciprocal %139 : vector<16x384xf32> -> vector<16x384xf32>
    %141 = arith.mulf %134, %140 : vector<16x384xf32>
    %c10 = arith.constant 10 : index
    %c0_81 = arith.constant 0 : index
    %c0_82 = arith.constant 0 : index
    %142 = vector.load %arg2[%c10, %c0_81, %c0_82] : memref<11x16x16xf32, #tpu.memory_space<vmem>>, vector<1x16x16xf32>
    %143 = vector.shape_cast %142 : vector<1x16x16xf32> to vector<16x16xf32>
    %144 = vector.extract_strided_slice %143 {offsets = [0, 0], sizes = [1, 16], strides = [1, 1]} : vector<16x16xf32> to vector<1x16xf32>
    %cst_83 = arith.constant dense<0.000000e+00> : vector<1x384xf32>
    %145 = tpu.matmul %144, %141, %cst_83 {dimension_numbers = #tpu.dot_dimension_numbers<[1], [0], [0], [1], [0, 0, 1, 1], [], []>} : vector<1x16xf32>, vector<16x384xf32>, vector<1x384xf32> -> vector<1x384xf32>
    %c10_84 = arith.constant 10 : index
    %c0_85 = arith.constant 0 : index
    %c0_86 = arith.constant 0 : index
    %146 = vector.load %arg3[%c10_84, %c0_85, %c0_86] : memref<11x16x1xf32, #tpu.memory_space<vmem>>, vector<1x16x1xf32>
    %147 = vector.shape_cast %146 : vector<1x16x1xf32> to vector<16x1xf32>
    %148 = vector.extract_strided_slice %147 {offsets = [0, 0], sizes = [1, 1], strides = [1, 1]} : vector<16x1xf32> to vector<1x1xf32>
    %149 = vector.broadcast %148 : vector<1x1xf32> to vector<1x384xf32>
    %150 = arith.addf %145, %149 : vector<1x384xf32>
    %c0_87 = arith.constant 0 : index
    %c0_88 = arith.constant 0 : index
    %151 = vector.load %arg4[%c0_87, %c0_88] : memref<1x384xf32, #tpu.memory_space<vmem>>, vector<1x384xf32>
    tpu.vector_store %arg4[%c0_87, %c0_88], %150 {strides = array<i32>} : memref<1x384xf32, #tpu.memory_space<vmem>>, vector<1x384xf32>,
    return
  }
  func.func @transform_0(%arg0: i32) -> (i32, i32) {
    %c0_i32 = arith.constant 0 : i32
    %c0_i32_0 = arith.constant 0 : i32
    return %c0_i32, %arg0 : i32, i32
  }
  func.func @transform_1(%arg0: i32) -> (i32, i32, i32) {
    %c0_i32 = arith.constant 0 : i32
    %c0_i32_0 = arith.constant 0 : i32
    %c0_i32_1 = arith.constant 0 : i32
    %c0_i32_2 = arith.constant 0 : i32
    return %c0_i32, %c0_i32_0, %c0_i32_1 : i32, i32, i32
  }
  func.func @transform_2(%arg0: i32) -> (i32, i32, i32) {
    %c0_i32 = arith.constant 0 : i32
    %c0_i32_0 = arith.constant 0 : i32
    %c0_i32_1 = arith.constant 0 : i32
    %c0_i32_2 = arith.constant 0 : i32
    return %c0_i32, %c0_i32_0, %c0_i32_1 : i32, i32, i32
  }
  func.func @transform_3(%arg0: i32) -> (i32, i32) {
    %c0_i32 = arith.constant 0 : i32
    %c0_i32_0 = arith.constant 0 : i32
    return %c0_i32, %arg0 : i32, i32
  }
}

</mosaic_0001>

<llo_original>
// kernel: pinn_t_forward.1
$region0: #{pinn_t_forward.1}
  #allocation0 [shape = 'u32[]', space=smem, size = 0x4, offset = 0x4, fixed_abs, tag = 'smem constant byte address 0x4 - core index']
  #allocation1 [shape = 'u32[144,128]{1,0:T(1,128)}', space=vmem, size = 0x12000, scoped, tag = 'internal scratch']
  %s0 = inlined_call_operand.vmem [shape: f32[2,768], index: 0, kind: input, shape index: {}]
  %s1 = inlined_call_operand.vmem [shape: f32[11,16,16], index: 1, kind: input, shape index: {}]
  %s2 = inlined_call_operand.vmem [shape: f32[11,16,1], index: 2, kind: input, shape index: {}]
  %s3 = inlined_call_operand.vmem [shape: f32[1,768], index: 3, kind: output, shape index: {}]
  %s4 = sld [smem:[#allocation0]]
  $region45: #{pinn_t_forward.1} parent=0
    _
  %s6 = ssub.s32 1, %s4
  %s7 = scalar_select 0, %s6, %s4
  loop: start=0, step=1, limit=4
  $region2: #{pinn_t_forward.1} parent=0 // loop_pre_header
    _
  $region3: #{pinn_t_forward.1} parent=0 // loop_header
    %s9 = sphi 0, %s13
    %p10 = scmp.ge.s32.totalorder %s9, 4
    %s19 = sphi 0, %s21
    %s22 = sphi 0, %s19
    %s23 = sphi 0, %s22
    %s39 = sphi 0, %s23
    %s43 = sphi 0, %s43
    %s45 = sphi 0, %s43
    %s46 = sphi 0, %s45
    %s60 = sphi 0, %s46
    %s64 = sphi 0, %s64
    %s66 = sphi 0, %s64
    %s67 = sphi 0, %s66
    %s81 = sphi 0, %s67
    %s87 = sphi 0, %s89
    %s90 = sphi 0, %s87
    %s91 = sphi 0, %s90
    %s107 = sphi 0, %s91
  $region4: #{pinn_t_forward.1} parent=0 // loop_header_branch
    %12 = sbr.rel (%p10) target = $region8
  $region5: #{pinn_t_forward.1} parent=0 // loop_body
    %s14 = ssub.s32 %s9, 1
    %s15 = ssub.s32 %s9, 2
    %s16 = sadd.s32 %s9, 1
    %s17 = ssub.s32 %s9, %s16
    %p18 = scmp.eq.s32.totalorder %s17, 0
    %s20 = sadd.s32 %s19, 1
    %s21 = scalar_select %p18, %s19, %s20
    %p24 = pneg %p18
    %p25 = scmp.eq.s32.totalorder %s9, 1
    %p26 = por %p24, %p25
    %p27 = scmp.ne.s32.totalorder %s19, %s22
    %p28 = scmp.eq.s32.totalorder %s9, 0
    %p29 = por %p27, %p28
    %p30 = scmp.ne.s32.totalorder %s19, %s22
    %p31 = scmp.eq.s32.totalorder %s14, 1
    %p32 = por %p30, %p31
    %p33 = scmp.ne.s32.totalorder %s22, %s23
    %p34 = scmp.eq.s32.totalorder %s14, 0
    %p35 = por %p33, %p34
    %p36 = scmp.ne.s32.totalorder %s22, %s23
    %p37 = scmp.eq.s32.totalorder %s15, 1
    %p38 = por %p36, %p37
    %p40 = scmp.ne.s32.totalorder %s23, %s39
    %p41 = scmp.eq.s32.totalorder %s15, 0
    %p42 = por %p40, %p41
    %s44 = sadd.s32 %s43, 1
    %p47 = scmp.eq.s32.totalorder %s9, 1
    %p48 = scmp.ne.s32.totalorder %s43, %s45
    %p49 = scmp.eq.s32.totalorder %s9, 0
    %p50 = por %p48, %p49
    %p51 = scmp.ne.s32.totalorder %s43, %s45
    %p52 = scmp.eq.s32.totalorder %s14, 1
    %p53 = por %p51, %p52
    %p54 = scmp.ne.s32.totalorder %s45, %s46
    %p55 = scmp.eq.s32.totalorder %s14, 0
    %p56 = por %p54, %p55
    %p57 = scmp.ne.s32.totalorder %s45, %s46
    %p58 = scmp.eq.s32.totalorder %s15, 1
    %p59 = por %p57, %p58
    %p61 = scmp.ne.s32.totalorder %s46, %s60
    %p62 = scmp.eq.s32.totalorder %s15, 0
    %p63 = por %p61, %p62
    %s65 = sadd.s32 %s64, 1
    %p68 = scmp.eq.s32.totalorder %s9, 1
    %p69 = scmp.ne.s32.totalorder %s64, %s66
    %p70 = scmp.eq.s32.totalorder %s9, 0
    %p71 = por %p69, %p70
    %p72 = scmp.ne.s32.totalorder %s64, %s66
    %p73 = scmp.eq.s32.totalorder %s14, 1
    %p74 = por %p72, %p73
    %p75 = scmp.ne.s32.totalorder %s66, %s67
    %p76 = scmp.eq.s32.totalorder %s14, 0
    %p77 = por %p75, %p76
    %p78 = scmp.ne.s32.totalorder %s66, %s67
    %p79 = scmp.eq.s32.totalorder %s15, 1
    %p80 = por %p78, %p79
    %p82 = scmp.ne.s32.totalorder %s67, %s81
    %p83 = scmp.eq.s32.totalorder %s15, 0
    %p84 = por %p82, %p83
    %s85 = ssub.s32 %s9, %s16
    %p86 = scmp.eq.s32.totalorder %s85, 0
    %s88 = sadd.s32 %s87, 1
    %s89 = scalar_select %p86, %s87, %s88
    %p92 = pneg %p86
    %p93 = scmp.eq.s32.totalorder %s9, 1
    %p94 = por %p92, %p93
    %p95 = scmp.ne.s32.totalorder %s87, %s90
    %p96 = scmp.eq.s32.totalorder %s9, 0
    %p97 = por %p95, %p96
    %p98 = scmp.ne.s32.totalorder %s87, %s90
    %p99 = scmp.eq.s32.totalorder %s14, 1
    %p100 = por %p98, %p99
    %p101 = scmp.ne.s32.totalorder %s90, %s91
    %p102 = scmp.eq.s32.totalorder %s14, 0
    %p103 = por %p101, %p102
    %p104 = scmp.ne.s32.totalorder %s90, %s91
    %p105 = scmp.eq.s32.totalorder %s15, 1
    %p106 = por %p104, %p105
    %p108 = scmp.ne.s32.totalorder %s91, %s107
    %p109 = scmp.eq.s32.totalorder %s15, 0
    %p110 = por %p108, %p109
    %p111 = scmp.le.s32.totalorder 1, %s9
    %p112 = scmp.lt.s32.totalorder %s9, 3
    %p113 = pnand %p111, %p112
    %p114 = pneg %p113
    // Predicated region
    $region9: #{pinn_t_forward.1} parent=5 // pred_check
      _
    $region10: #{pinn_t_forward.1} parent=5 // pred_check_branch
      %116 = sbr.rel (%p113) target = $region12
    $region11: #{pinn_t_forward.1} parent=5 // pred_region
      %s117 = ssub.s32 %s9, 1
      // Predicated region
      $region13: #{pinn_t_forward.1} parent=11 // pred_check
        %p118 = pneg %p56
      $region14: #{pinn_t_forward.1} parent=11 // pred_check_branch
        %120 = sbr.rel (%p118) target = $region16
      $region15: #{pinn_t_forward.1} parent=11 // pred_region
        _
      $region16: #{pinn_t_forward.1} parent=11 // pred_fallthru
        _
      // Predicated region
      $region17: #{pinn_t_forward.1} parent=11 // pred_check
        %p121 = pneg %p77
      $region18: #{pinn_t_forward.1} parent=11 // pred_check_branch
        %123 = sbr.rel (%p121) target = $region20
      $region19: #{pinn_t_forward.1} parent=11 // pred_region
        _
      $region20: #{pinn_t_forward.1} parent=11 // pred_fallthru
        _
    $region12: #{pinn_t_forward.1} parent=5 // pred_fallthru
      _
    %p124 = scmp.lt.s32.totalorder %s9, 2
    // Predicated region
    $region21: #{pinn_t_forward.1} parent=5 // pred_check
      %p125 = pneg %p124
    $region22: #{pinn_t_forward.1} parent=5 // pred_check_branch
      %127 = sbr.rel (%p125) target = $region24
    $region23: #{pinn_t_forward.1} parent=5 // pred_region
      // Predicated region
      $region25: #{pinn_t_forward.1} parent=23 // pred_check
        %p128 = pneg %p29
      $region26: #{pinn_t_forward.1} parent=23 // pred_check_branch
        %130 = sbr.rel (%p128) target = $region28
      $region27: #{pinn_t_forward.1} parent=23 // pred_region
        %s131 = smul.u32 3, %s9
        %p132 = scmp.lt.s32.totalorder %s131, 5
        %s133 = scalar_select %p132, %s131, 5
        %s134 = smul.addr %s133, 2
        %s135 = scalar_lea.vmem %s0, %s134
        %s136 = smul.u32 3, %s9
      $region28: #{pinn_t_forward.1} parent=23 // pred_fallthru
        _
    $region24: #{pinn_t_forward.1} parent=5 // pred_fallthru
      _
    %p137 = scmp.le.s32.totalorder 1, %s9
    %p138 = scmp.lt.s32.totalorder %s9, 3
    %p139 = pnand %p137, %p138
    %p140 = pneg %p139
    // Predicated region
    $region29: #{pinn_t_forward.1} parent=5 // pred_check
      _
    $region30: #{pinn_t_forward.1} parent=5 // pred_check_branch
      %142 = sbr.rel (%p139) target = $region32
    $region31: #{pinn_t_forward.1} parent=5 // pred_region
      %s143 = ssub.s32 %s9, 1
      %s144 = smul.u32 3, %s14
      %p145 = scmp.lt.s32.totalorder %s144, 5
      %s146 = scalar_select %p145, %s144, 5
      %s147 = smul.addr %s146, 2
      %s148 = scalar_lea.vmem %s0, %s147
      %p149 = pneg %p35
      %p150 = pneg %p32
      %p151 = pneg %p56
      %p152 = pneg %p53
      %p153 = pneg %p77
      %p154 = pneg %p74
      %p155 = pneg %p103
      %p156 = pneg %p100
      %s157 = smul.u32 3, %s14
      %p158 = scmp.lt.s32.totalorder %s157, 5
      %s159 = scalar_select %p158, %s157, 5
      %s160 = scalar_lea.vmem %s3, %s159
      %s161 = smul.u32 3, %s14
      %p162 = scmp.lt.s32.totalorder %s161, 5
      %s163 = scalar_select %p162, %s161, 5
      %s164 = smul.addr %s163, 2
      %s165 = scalar_lea.vmem %s0, %s164
      %s166 = smul.u32 3, %s14
      %s167 = smul.u32 3, %s14
      %p168 = scmp.lt.s32.totalorder %s167, 5
      %s169 = scalar_select %p168, %s167, 5
      %s170 = scalar_lea.vmem %s3, %s169
      %s171 = smul.u32 3, %s14
      %v172 = vld [vmem:[%s1] sm:$0xff]
      %v173 = vld [vmem:[%s1 + $0x8] sm:$0xff]
      %v174 = vld [vmem:[%s165] sm:$0x3f]
      %v175 = vld [vmem:[%s2] sm:$0xff]
      %v176 = vld [vmem:[%s2 + $0x8] sm:$0xff]
      %178 = vset.pattern.permute.xlu0 0
      %179 = vperm.xlu0 %178, %v175
      %v180 = vpop.permute.xlu0 %179
      %183 = vset.pattern.permute.xlu0 0
      %184 = vperm.xlu0 %183, %v176
      %v185 = vpop.permute.xlu0 %184
      %v188 = vcombine.high %v174, %v174
      %v190 = vunpack.c.l.s4 1983009808
      %v191 = vunpack.c.0.s8 %v190
      %v192 = vlaneseq
      %v193 = vshrl.u32 %v192, 7
      %v194 = vsub.s32 %v191, %v193
      %v195 = vrot.slane %v174, %v194
      %v197 = vunpack.c.l.s4 1983009808
      %v198 = vunpack.c.0.s8 %v197
      %v199 = vlaneseq
      %v200 = vshrl.u32 %v199, 7
      %v201 = vsub.s32 %v198, %v200
      %v202 = vrot.slane %v188, %v201
      %v203 = vcombine.high %v195, %v195
      %vm204 = vcmask 15360
      %v206 = vsel %vm204, %v172, 0
      %v209 = vsel %vm204, %v173, 0
      %vm211 = vcmask 1041408
      %v212 = vsel %vm211, %v195, 0
      %v214 = vsel %vm211, %v203, 0
      %v216 = vsel %vm211, %v202, 0
      %218 = vmatprep.subr.mxu0 %v214
      %219 = vmatpush1.msra.mxu0 %v212
      %220 = vmatprep.subr.mxu0 0.0
      %221 = vmatpush1.msra.mxu0 0.0
      %222 = vmatprep.subr.mxu0 0.0
      %223 = vmatpush1.msra.mxu0 0.0
      %224 = vmatprep.subr.mxu0 0.0
      %225 = vmatpush1.msra.mxu0 0.0
      %226 = vmatprep.subr.mxu0 0.0
      %227 = vmatpush1.msra.mxu0 0.0
      %228 = vmatprep.subr.mxu0 0.0
      %229 = vmatpush1.msra.mxu0 0.0
      %230 = vmatprep.subr.mxu0 0.0
      %231 = vmatpush1.msra.mxu0 0.0
      %232 = vmatprep.subr.mxu0 0.0
      %233 = vmatpush1.msra.mxu0 0.0
      %234 = vmatprep.subr.mxu0 0.0
      %235 = vmatpush1.msra.mxu0 0.0
      %236 = vmatprep.subr.mxu0 0.0
      %237 = vmatpush1.msra.mxu0 0.0
      %238 = vmatprep.subr.mxu0 0.0
      %239 = vmatpush1.msra.mxu0 0.0
      %240 = vmatprep.subr.mxu0 0.0
      %241 = vmatpush1.msra.mxu0 0.0
      %242 = vmatprep.subr.mxu0 0.0
      %243 = vmatpush1.msra.mxu0 0.0
      %244 = vmatprep.subr.mxu0 0.0
      %245 = vmatpush1.msra.mxu0 0.0
      %246 = vmatprep.subr.mxu0 0.0
      %247 = vmatpush1.msra.mxu0 0.0
      %248 = vmatprep.subr.mxu0 0.0
      %249 = vmatpush1.msra.mxu0 0.0
      %250 = vmatprep.subr.mxu0 0.0
      %251 = vmatpush1.msra.mxu0 0.0
      %252 = vmatprep.subr.mxu0 0.0
      %253 = vmatpush1.msra.mxu0 0.0
      %254 = vmatprep.subr.mxu0 0.0
      %255 = vmatpush1.msra.mxu0 0.0
      %256 = vmatprep.subr.mxu0 0.0
      %257 = vmatpush1.msra.mxu0 0.0
      %258 = vmatprep.subr.mxu0 0.0
      %259 = vmatpush1.msra.mxu0 0.0
      %260 = vmatprep.subr.mxu0 0.0
      %261 = vmatpush1.msra.mxu0 0.0
      %262 = vmatprep.subr.mxu0 0.0
      %263 = vmatpush1.msra.mxu0 0.0
      %264 = vmatprep.subr.mxu0 0.0
      %265 = vmatpush1.msra.mxu0 0.0
      %266 = vmatprep.subr.mxu0 0.0
      %267 = vmatpush1.msra.mxu0 0.0
      %268 = vmatprep.subr.mxu0 0.0
      %269 = vmatpush1.msra.mxu0 0.0
      %270 = vmatprep.subr.mxu0 0.0
      %271 = vmatpush1.msra.mxu0 0.0
      %272 = vmatprep.subr.mxu0 0.0
      %273 = vmatpush1.msra.mxu0 0.0
      %274 = vmatprep.subr.mxu0 0.0
      %275 = vmatpush1.msra.mxu0 0.0
      %276 = vmatprep.subr.mxu0 0.0
      %277 = vmatpush1.msra.mxu0 0.0
      %278 = vmatprep.subr.mxu0 0.0
      %279 = vmatpush1.msra.mxu0 0.0
      %280 = vmatprep.subr.mxu0 0.0
      %281 = vmatpush1.msra.mxu0 0.0
      %282 = vmatprep.mubr.f32.mxu0 0.0
      %283 = vmatmul.mubr.f32.gmra.mrb[0].mxu0 %v206
      %v284 = vpop.f32.mrb[0].mxu0
      %v285 = vadd.f32 %v180, %v284
      %v286 = vpop.f32.mrb[0].mxu0
      %v287 = vadd.f32 %v180, %v286
      %288 = vmatprep.mubr.f32.mxu0 0.0
      %289 = vmatmul.mubr.f32.gmra.mrb[0].mxu0 %v209
      %v290 = vpop.f32.mrb[0].mxu0
      %v291 = vadd.f32 %v185, %v290
      %v292 = vpop.f32.mrb[0].mxu0
      %v293 = vadd.f32 %v185, %v292
      %294 = vdwg.mxu0
      %295 = vmatprep.subr.mxu0 0.0
      %296 = vmatpush1.msra.mxu0 %v216
      %297 = vmatprep.subr.mxu0 0.0
      %298 = vmatpush1.msra.mxu0 0.0
      %299 = vmatprep.subr.mxu0 0.0
      %300 = vmatpush1.msra.mxu0 0.0
      %301 = vmatprep.subr.mxu0 0.0
      %302 = vmatpush1.msra.mxu0 0.0
      %303 = vmatprep.subr.mxu0 0.0
      %304 = vmatpush1.msra.mxu0 0.0
      %305 = vmatprep.subr.mxu0 0.0
      %306 = vmatpush1.msra.mxu0 0.0
      %307 = vmatprep.subr.mxu0 0.0
      %308 = vmatpush1.msra.mxu0 0.0
      %309 = vmatprep.subr.mxu0 0.0
      %310 = vmatpush1.msra.mxu0 0.0
      %311 = vmatprep.subr.mxu0 0.0
      %312 = vmatpush1.msra.mxu0 0.0
      %313 = vmatprep.subr.mxu0 0.0
      %314 = vmatpush1.msra.mxu0 0.0
      %315 = vmatprep.subr.mxu0 0.0
      %316 = vmatpush1.msra.mxu0 0.0
      %317 = vmatprep.subr.mxu0 0.0
      %318 = vmatpush1.msra.mxu0 0.0
      %319 = vmatprep.subr.mxu0 0.0
      %320 = vmatpush1.msra.mxu0 0.0
      %321 = vmatprep.subr.mxu0 0.0
      %322 = vmatpush1.msra.mxu0 0.0
      %323 = vmatprep.subr.mxu0 0.0
      %324 = vmatpush1.msra.mxu0 0.0
      %325 = vmatprep.subr.mxu0 0.0
      %326 = vmatpush1.msra.mxu0 0.0
      %327 = vmatprep.subr.mxu0 0.0
      %328 = vmatpush1.msra.mxu0 0.0
      %329 = vmatprep.subr.mxu0 0.0
      %330 = vmatpush1.msra.mxu0 0.0
      %331 = vmatprep.subr.mxu0 0.0
      %332 = vmatpush1.msra.mxu0 0.0
      %333 = vmatprep.subr.mxu0 0.0
      %334 = vmatpush1.msra.mxu0 0.0
      %335 = vmatprep.subr.mxu0 0.0
      %336 = vmatpush1.msra.mxu0 0.0
      %337 = vmatprep.subr.mxu0 0.0
      %338 = vmatpush1.msra.mxu0 0.0
      %339 = vmatprep.subr.mxu0 0.0
      %340 = vmatpush1.msra.mxu0 0.0
      %341 = vmatprep.subr.mxu0 0.0
      %342 = vmatpush1.msra.mxu0 0.0
      %343 = vmatprep.subr.mxu0 0.0
      %344 = vmatpush1.msra.mxu0 0.0
      %345 = vmatprep.subr.mxu0 0.0
      %346 = vmatpush1.msra.mxu0 0.0
      %347 = vmatprep.subr.mxu0 0.0
      %348 = vmatpush1.msra.mxu0 0.0
      %349 = vmatprep.subr.mxu0 0.0
      %350 = vmatpush1.msra.mxu0 0.0
      %351 = vmatprep.subr.mxu0 0.0
      %352 = vmatpush1.msra.mxu0 0.0
      %353 = vmatprep.subr.mxu0 0.0
      %354 = vmatpush1.msra.mxu0 0.0
      %355 = vmatprep.subr.mxu0 0.0
      %356 = vmatpush1.msra.mxu0 0.0
      %357 = vmatprep.subr.mxu0 0.0
      %358 = vmatpush1.msra.mxu0 0.0
      %359 = vmatprep.mubr.f32.mxu0 0.0
      %360 = vmatmul.mubr.f32.gmra.mrb[0].mxu0 %v206
      %v361 = vpop.f32.mrb[0].mxu0
      %v362 = vadd.f32 %v180, %v361
      %v363 = vpop.f32.mrb[0].mxu0
      %364 = vmatprep.mubr.f32.mxu0 0.0
      %365 = vmatmul.mubr.f32.gmra.mrb[0].mxu0 %v209
      %v366 = vpop.f32.mrb[0].mxu0
      %v367 = vadd.f32 %v185, %v366
      %v368 = vpop.f32.mrb[0].mxu0
      %369 = vdwg.mxu0
      %v370 = vsub.f32 0.0, %v285
      %v371 = vsub.f32 0.0, %v287
      %v372 = vsub.f32 0.0, %v362
      %v373 = vsub.f32 0.0, %v291
      %v374 = vsub.f32 0.0, %v293
      %v375 = vsub.f32 0.0, %v367
      %v376 = vmul.f32 %v370, 1.442695
      %v377 = vpow.pop %v376
      %v378 = vmul.f32 %v371, 1.442695
      %v379 = vpow.pop %v378
      %v380 = vmul.f32 %v372, 1.442695
      %v381 = vpow.pop %v380
      %v382 = vmul.f32 %v373, 1.442695
      %v383 = vpow.pop %v382
      %v384 = vmul.f32 %v374, 1.442695
      %v385 = vpow.pop %v384
      %v386 = vmul.f32 %v375, 1.442695
      %v387 = vpow.pop %v386
      %v388 = vadd.f32 %v377, 1.0
      %v389 = vadd.f32 %v379, 1.0
      %v390 = vadd.f32 %v381, 1.0
      %v391 = vadd.f32 %v383, 1.0
      %v392 = vadd.f32 %v385, 1.0
      %v393 = vadd.f32 %v387, 1.0
      %v394 = vrcp.pop %v388
      %v395 = vrcp.pop %v389
      %v396 = vrcp.pop %v390
      %v397 = vrcp.pop %v391
      %v398 = vrcp.pop %v392
      %v399 = vrcp.pop %v393
      %v400 = vmul.f32 %v285, %v394
      %v401 = vmul.f32 %v287, %v395
      %v402 = vmul.f32 %v362, %v396
      %v403 = vmul.f32 %v291, %v397
      %v404 = vmul.f32 %v293, %v398
      %v405 = vmul.f32 %v367, %v399
      %s406 = scalar_lea.vmem %s1, 16
      %v407 = vld [vmem:[%s406] sm:$0xff]
      %v408 = vld [vmem:[%s406 + $0x8] sm:$0xff]
      %s409 = scalar_lea.vmem %s2, 16
      %v410 = vld [vmem:[%s409] sm:$0xff]
      %v411 = vld [vmem:[%s409 + $0x8] sm:$0xff]
      %413 = vset.pattern.permute.xlu0 0
      %414 = vperm.xlu0 %413, %v410
      %v415 = vpop.permute.xlu0 %414
      %418 = vset.pattern.permute.xlu0 0
      %419 = vperm.xlu0 %418, %v411
      %v420 = vpop.permute.xlu0 %419
      %vm422 = vcmask 130048
      %v424 = vsel %vm422, %v407, 0
      %v427 = vsel %vm422, %v408, 0
      %429 = vmatprep.subr.mxu0 %v401
      %430 = vmatpush1.msra.mxu0 %v400
      %431 = vmatprep.subr.mxu0 %v404
      %432 = vmatpush1.msra.mxu0 %v403
      %433 = vmatprep.subr.mxu0 0.0
      %434 = vmatpush1.msra.mxu0 0.0
      %435 = vmatprep.subr.mxu0 0.0
      %436 = vmatpush1.msra.mxu0 0.0
      %437 = vmatprep.subr.mxu0 0.0
      %438 = vmatpush1.msra.mxu0 0.0
      %439 = vmatprep.subr.mxu0 0.0
      %440 = vmatpush1.msra.mxu0 0.0
      %441 = vmatprep.subr.mxu0 0.0
      %442 = vmatpush1.msra.mxu0 0.0
      %443 = vmatprep.subr.mxu0 0.0
      %444 = vmatpush1.msra.mxu0 0.0
      %445 = vmatprep.subr.mxu0 0.0
      %446 = vmatpush1.msra.mxu0 0.0
      %447 = vmatprep.subr.mxu0 0.0
      %448 = vmatpush1.msra.mxu0 0.0
      %449 = vmatprep.subr.mxu0 0.0
      %450 = vmatpush1.msra.mxu0 0.0
      %451 = vmatprep.subr.mxu0 0.0
      %452 = vmatpush1.msra.mxu0 0.0
      %453 = vmatprep.subr.mxu0 0.0
      %454 = vmatpush1.msra.mxu0 0.0
      %455 = vmatprep.subr.mxu0 0.0
      %456 = vmatpush1.msra.mxu0 0.0
      %457 = vmatprep.subr.mxu0 0.0
      %458 = vmatpush1.msra.mxu0 0.0
      %459 = vmatprep.subr.mxu0 0.0
      %460 = vmatpush1.msra.mxu0 0.0
      %461 = vmatprep.subr.mxu0 0.0
      %462 = vmatpush1.msra.mxu0 0.0
      %463 = vmatprep.subr.mxu0 0.0
      %464 = vmatpush1.msra.mxu0 0.0
      %465 = vmatprep.subr.mxu0 0.0
      %466 = vmatpush1.msra.mxu0 0.0
      %467 = vmatprep.subr.mxu0 0.0
      %468 = vmatpush1.msra.mxu0 0.0
      %469 = vmatprep.subr.mxu0 0.0
      %470 = vmatpush1.msra.mxu0 0.0
      %471 = vmatprep.subr.mxu0 0.0
      %472 = vmatpush1.msra.mxu0 0.0
      %473 = vmatprep.subr.mxu0 0.0
      %474 = vmatpush1.msra.mxu0 0.0
      %475 = vmatprep.subr.mxu0 0.0
      %476 = vmatpush1.msra.mxu0 0.0
      %477 = vmatprep.subr.mxu0 0.0
      %478 = vmatpush1.msra.mxu0 0.0
      %479 = vmatprep.subr.mxu0 0.0
      %480 = vmatpush1.msra.mxu0 0.0
      %481 = vmatprep.subr.mxu0 0.0
      %482 = vmatpush1.msra.mxu0 0.0
      %483 = vmatprep.subr.mxu0 0.0
      %484 = vmatpush1.msra.mxu0 0.0
      %485 = vmatprep.subr.mxu0 0.0
      %486 = vmatpush1.msra.mxu0 0.0
      %487 = vmatprep.subr.mxu0 0.0
      %488 = vmatpush1.msra.mxu0 0.0
      %489 = vmatprep.subr.mxu0 0.0
      %490 = vmatpush1.msra.mxu0 0.0
      %491 = vmatprep.subr.mxu0 0.0
      %492 = vmatpush1.msra.mxu0 0.0
      %493 = vmatprep.mubr.f32.mxu0 0.0
      %494 = vmatmul.mubr.f32.gmra.mrb[0].mxu0 %v424
      %v495 = vpop.f32.mrb[0].mxu0
      %v496 = vadd.f32 %v415, %v495
      %v497 = vpop.f32.mrb[0].mxu0
      %v498 = vadd.f32 %v415, %v497
      %499 = vmatprep.mubr.f32.mxu0 0.0
      %500 = vmatmul.mubr.f32.gmra.mrb[0].mxu0 %v427
      %v501 = vpop.f32.mrb[0].mxu0
      %v502 = vadd.f32 %v420, %v501
      %v503 = vpop.f32.mrb[0].mxu0
      %v504 = vadd.f32 %v420, %v503
      %505 = vdwg.mxu0
      %506 = vmatprep.subr.mxu0 0.0
      %507 = vmatpush1.msra.mxu0 %v402
      %508 = vmatprep.subr.mxu0 0.0
      %509 = vmatpush1.msra.mxu0 %v405
      %510 = vmatprep.subr.mxu0 0.0
      %511 = vmatpush1.msra.mxu0 0.0
      %512 = vmatprep.subr.mxu0 0.0
      %513 = vmatpush1.msra.mxu0 0.0
      %514 = vmatprep.subr.mxu0 0.0
      %515 = vmatpush1.msra.mxu0 0.0
      %516 = vmatprep.subr.mxu0 0.0
      %517 = vmatpush1.msra.mxu0 0.0
      %518 = vmatprep.subr.mxu0 0.0
      %519 = vmatpush1.msra.mxu0 0.0
      %520 = vmatprep.subr.mxu0 0.0
      %521 = vmatpush1.msra.mxu0 0.0
      %522 = vmatprep.subr.mxu0 0.0
      %523 = vmatpush1.msra.mxu0 0.0
      %524 = vmatprep.subr.mxu0 0.0
      %525 = vmatpush1.msra.mxu0 0.0
      %526 = vmatprep.subr.mxu0 0.0
      %527 = vmatpush1.msra.mxu0 0.0
      %528 = vmatprep.subr.mxu0 0.0
      %529 = vmatpush1.msra.mxu0 0.0
      %530 = vmatprep.subr.mxu0 0.0
      %531 = vmatpush1.msra.mxu0 0.0
      %532 = vmatprep.subr.mxu0 0.0
      %533 = vmatpush1.msra.mxu0 0.0
      %534 = vmatprep.subr.mxu0 0.0
      %535 = vmatpush1.msra.mxu0 0.0
      %536 = vmatprep.subr.mxu0 0.0
      %537 = vmatpush1.msra.mxu0 0.0
      %538 = vmatprep.subr.mxu0 0.0
      %539 = vmatpush1.msra.mxu0 0.0
      %540 = vmatprep.subr.mxu0 0.0
      %541 = vmatpush1.msra.mxu0 0.0
      %542 = vmatprep.subr.mxu0 0.0
      %543 = vmatpush1.msra.mxu0 0.0
      %544 = vmatprep.subr.mxu0 0.0
      %545 = vmatpush1.msra.mxu0 0.0
      %546 = vmatprep.subr.mxu0 0.0
      %547 = vmatpush1.msra.mxu0 0.0
      %548 = vmatprep.subr.mxu0 0.0
      %549 = vmatpush1.msra.mxu0 0.0
      %550 = vmatprep.subr.mxu0 0.0
      %551 = vmatpush1.msra.mxu0 0.0
      %552 = vmatprep.subr.mxu0 0.0
      %553 = vmatpush1.msra.mxu0 0.0
      %554 = vmatprep.subr.mxu0 0.0
      %555 = vmatpush1.msra.mxu0 0.0
      %556 = vmatprep.subr.mxu0 0.0
      %557 = vmatpush1.msra.mxu0 0.0
      %558 = vmatprep.subr.mxu0 0.0
      %559 = vmatpush1.msra.mxu0 0.0
      %560 = vmatprep.subr.mxu0 0.0
      %561 = vmatpush1.msra.mxu0 0.0
      %562 = vmatprep.subr.mxu0 0.0
      %563 = vmatpush1.msra.mxu0 0.0
      %564 = vmatprep.subr.mxu0 0.0
      %565 = vmatpush1.msra.mxu0 0.0
      %566 = vmatprep.subr.mxu0 0.0
      %567 = vmatpush1.msra.mxu0 0.0
      %568 = vmatprep.subr.mxu0 0.0
      %569 = vmatpush1.msra.mxu0 0.0
      %570 = vmatprep.mubr.f32.mxu0 0.0
      %571 = vmatmul.mubr.f32.gmra.mrb[0].mxu0 %v424
      %v572 = vpop.f32.mrb[0].mxu0
      %v573 = vadd.f32 %v415, %v572
      %v574 = vpop.f32.mrb[0].mxu0
      %575 = vmatprep.mubr.f32.mxu0 0.0
      %576 = vmatmul.mubr.f32.gmra.mrb[0].mxu0 %v427
      %v577 = vpop.f32.mrb[0].mxu0
      %v578 = vadd.f32 %v420, %v577
      %v579 = vpop.f32.mrb[0].mxu0
      %580 = vdwg.mxu0
      %v581 = vsub.f32 0.0, %v496
      %v582 = vsub.f32 0.0, %v498
      %v583 = vsub.f32 0.0, %v573
      %v584 = vsub.f32 0.0, %v502
      %v585 = vsub.f32 0.0, %v504
      %v586 = vsub.f32 0.0, %v578
      %v587 = vmul.f32 %v581, 1.442695
      %v588 = vpow.pop %v587
      %v589 = vmul.f32 %v582, 1.442695
      %v590 = vpow.pop %v589
      %v591 = vmul.f32 %v583, 1.442695
      %v592 = vpow.pop %v591
      %v593 = vmul.f32 %v584, 1.442695
      %v594 = vpow.pop %v593
      %v595 = vmul.f32 %v585, 1.442695
      %v596 = vpow.pop %v595
      %v597 = vmul.f32 %v586, 1.442695
      %v598 = vpow.pop %v597
      %v599 = vadd.f32 %v588, 1.0
      %v600 = vadd.f32 %v590, 1.0
      %v601 = vadd.f32 %v592, 1.0
      %v602 = vadd.f32 %v594, 1.0
      %v603 = vadd.f32 %v596, 1.0
      %v604 = vadd.f32 %v598, 1.0
      %v605 = vrcp.pop %v599
      %v606 = vrcp.pop %v600
      %v607 = vrcp.pop %v601
      %v608 = vrcp.pop %v602
      %v609 = vrcp.pop %v603
      %v610 = vrcp.pop %v604
      %v611 = vmul.f32 %v496, %v605
      %v612 = vmul.f32 %v498, %v606
      %v613 = vmul.f32 %v573, %v607
      %v614 = vmul.f32 %v502, %v608
      %v615 = vmul.f32 %v504, %v609
      %v616 = vmul.f32 %v578, %v610
      %s617 = scalar_lea.vmem %s1, 32
      %v618 = vld [vmem:[%s617] sm:$0xff]
      %v619 = vld [vmem:[%s617 + $0x8] sm:$0xff]
      %s620 = scalar_lea.vmem %s2, 32
      %v621 = vld [vmem:[%s620] sm:$0xff]
      %v622 = vld [vmem:[%s620 + $0x8] sm:$0xff]
      %624 = vset.pattern.permute.xlu0 0
      %625 = vperm.xlu0 %624, %v621
      %v626 = vpop.permute.xlu0 %625
      %629 = vset.pattern.permute.xlu0 0
      %630 = vperm.xlu0 %629, %v622
      %v631 = vpop.permute.xlu0 %630
      %v634 = vsel %vm422, %v618, 0
      %v637 = vsel %vm422, %v619, 0
      %639 = vmatprep.subr.mxu0 %v612
      %640 = vmatpush1.msra.mxu0 %v611
      %641 = vmatprep.subr.mxu0 %v615
      %642 = vmatpush1.msra.mxu0 %v614
      %643 = vmatprep.subr.mxu0 0.0
      %644 = vmatpush1.msra.mxu0 0.0
      %645 = vmatprep.subr.mxu0 0.0
      %646 = vmatpush1.msra.mxu0 0.0
      %647 = vmatprep.subr.mxu0 0.0
      %648 = vmatpush1.msra.mxu0 0.0
      %649 = vmatprep.subr.mxu0 0.0
      %650 = vmatpush1.msra.mxu0 0.0
      %651 = vmatprep.subr.mxu0 0.0
      %652 = vmatpush1.msra.mxu0 0.0
      %653 = vmatprep.subr.mxu0 0.0
      %654 = vmatpush1.msra.mxu0 0.0
      %655 = vmatprep.subr.mxu0 0.0
      %656 = vmatpush1.msra.mxu0 0.0
      %657 = vmatprep.subr.mxu0 0.0
      %658 = vmatpush1.msra.mxu0 0.0
      %659 = vmatprep.subr.mxu0 0.0
      %660 = vmatpush1.msra.mxu0 0.0
      %661 = vmatprep.subr.mxu0 0.0
      %662 = vmatpush1.msra.mxu0 0.0
      %663 = vmatprep.subr.mxu0 0.0
      %664 = vmatpush1.msra.mxu0 0.0
      %665 = vmatprep.subr.mxu0 0.0
      %666 = vmatpush1.msra.mxu0 0.0
      %667 = vmatprep.subr.mxu0 0.0
      %668 = vmatpush1.msra.mxu0 0.0
      %669 = vmatprep.subr.mxu0 0.0
      %670 = vmatpush1.msra.mxu0 0.0
      %671 = vmatprep.subr.mxu0 0.0
      %672 = vmatpush1.msra.mxu0 0.0
      %673 = vmatprep.subr.mxu0 0.0
      %674 = vmatpush1.msra.mxu0 0.0
      %675 = vmatprep.subr.mxu0 0.0
      %676 = vmatpush1.msra.mxu0 0.0
      %677 = vmatprep.subr.mxu0 0.0
      %678 = vmatpush1.msra.mxu0 0.0
      %679 = vmatprep.subr.mxu0 0.0
      %680 = vmatpush1.msra.mxu0 0.0
      %681 = vmatprep.subr.mxu0 0.0
      %682 = vmatpush1.msra.mxu0 0.0
      %683 = vmatprep.subr.mxu0 0.0
      %684 = vmatpush1.msra.mxu0 0.0
      %685 = vmatprep.subr.mxu0 0.0
      %686 = vmatpush1.msra.mxu0 0.0
      %687 = vmatprep.subr.mxu0 0.0
      %688 = vmatpush1.msra.mxu0 0.0
      %689 = vmatprep.subr.mxu0 0.0
      %690 = vmatpush1.msra.mxu0 0.0
      %691 = vmatprep.subr.mxu0 0.0
      %692 = vmatpush1.msra.mxu0 0.0
      %693 = vmatprep.subr.mxu0 0.0
      %694 = vmatpush1.msra.mxu0 0.0
      %695 = vmatprep.subr.mxu0 0.0
      %696 = vmatpush1.msra.mxu0 0.0
      %697 = vmatprep.subr.mxu0 0.0
      %698 = vmatpush1.msra.mxu0 0.0
      %699 = vmatprep.subr.mxu0 0.0
      %700 = vmatpush1.msra.mxu0 0.0
      %701 = vmatprep.subr.mxu0 0.0
      %702 = vmatpush1.msra.mxu0 0.0
      %703 = vmatprep.mubr.f32.mxu0 0.0
      %704 = vmatmul.mubr.f32.gmra.mrb[0].mxu0 %v634
      %v705 = vpop.f32.mrb[0].mxu0
      %v706 = vadd.f32 %v626, %v705
      %v707 = vpop.f32.mrb[0].mxu0
      %v708 = vadd.f32 %v626, %v707
      %709 = vmatprep.mubr.f32.mxu0 0.0
      %710 = vmatmul.mubr.f32.gmra.mrb[0].mxu0 %v637
      %v711 = vpop.f32.mrb[0].mxu0
      %v712 = vadd.f32 %v631, %v711
      %v713 = vpop.f32.mrb[0].mxu0
      %v714 = vadd.f32 %v631, %v713
      %715 = vdwg.mxu0
      %716 = vmatprep.subr.mxu0 0.0
      %717 = vmatpush1.msra.mxu0 %v613
      %718 = vmatprep.subr.mxu0 0.0
      %719 = vmatpush1.msra.mxu0 %v616
      %720 = vmatprep.subr.mxu0 0.0
      %721 = vmatpush1.msra.mxu0 0.0
      %722 = vmatprep.subr.mxu0 0.0
      %723 = vmatpush1.msra.mxu0 0.0
      %724 = vmatprep.subr.mxu0 0.0
      %725 = vmatpush1.msra.mxu0 0.0
      %726 = vmatprep.subr.mxu0 0.0
      %727 = vmatpush1.msra.mxu0 0.0
      %728 = vmatprep.subr.mxu0 0.0
      %729 = vmatpush1.msra.mxu0 0.0
      %730 = vmatprep.subr.mxu0 0.0
      %731 = vmatpush1.msra.mxu0 0.0
      %732 = vmatprep.subr.mxu0 0.0
      %733 = vmatpush1.msra.mxu0 0.0
      %734 = vmatprep.subr.mxu0 0.0
      %735 = vmatpush1.msra.mxu0 0.0
      %736 = vmatprep.subr.mxu0 0.0
      %737 = vmatpush1.msra.mxu0 0.0
      %738 = vmatprep.subr.mxu0 0.0
      %739 = vmatpush1.msra.mxu0 0.0
      %740 = vmatprep.subr.mxu0 0.0
      %741 = vmatpush1.msra.mxu0 0.0
      %742 = vmatprep.subr.mxu0 0.0
      %743 = vmatpush1.msra.mxu0 0.0
      %744 = vmatprep.subr.mxu0 0.0
      %745 = vmatpush1.msra.mxu0 0.0
      %746 = vmatprep.subr.mxu0 0.0
      %747 = vmatpush1.msra.mxu0 0.0
      %748 = vmatprep.subr.mxu0 0.0
      %749 = vmatpush1.msra.mxu0 0.0
      %750 = vmatprep.subr.mxu0 0.0
      %751 = vmatpush1.msra.mxu0 0.0
      %752 = vmatprep.subr.mxu0 0.0
      %753 = vmatpush1.msra.mxu0 0.0
      %754 = vmatprep.subr.mxu0 0.0
      %755 = vmatpush1.msra.mxu0 0.0
      %756 = vmatprep.subr.mxu0 0.0
      %757 = vmatpush1.msra.mxu0 0.0
      %758 = vmatprep.subr.mxu0 0.0
      %759 = vmatpush1.msra.mxu0 0.0
      %760 = vmatprep.subr.mxu0 0.0
      %761 = vmatpush1.msra.mxu0 0.0
      %762 = vmatprep.subr.mxu0 0.0
      %763 = vmatpush1.msra.mxu0 0.0
      %764 = vmatprep.subr.mxu0 0.0
      %765 = vmatpush1.msra.mxu0 0.0
      %766 = vmatprep.subr.mxu0 0.0
      %767 = vmatpush1.msra.mxu0 0.0
      %768 = vmatprep.subr.mxu0 0.0
      %769 = vmatpush1.msra.mxu0 0.0
      %770 = vmatprep.subr.mxu0 0.0
      %771 = vmatpush1.msra.mxu0 0.0
      %772 = vmatprep.subr.mxu0 0.0
      %773 = vmatpush1.msra.mxu0 0.0
      %774 = vmatprep.subr.mxu0 0.0
      %775 = vmatpush1.msra.mxu0 0.0
      %776 = vmatprep.subr.mxu0 0.0
      %777 = vmatpush1.msra.mxu0 0.0
      %778 = vmatprep.subr.mxu0 0.0
      %779 = vmatpush1.msra.mxu0 0.0
      %780 = vmatprep.mubr.f32.mxu0 0.0
      %781 = vmatmul.mubr.f32.gmra.mrb[0].mxu0 %v634
      %v782 = vpop.f32.mrb[0].mxu0
      %v783 = vadd.f32 %v626, %v782
      %v784 = vpop.f32.mrb[0].mxu0
      %785 = vmatprep.mubr.f32.mxu0 0.0
      %786 = vmatmul.mubr.f32.gmra.mrb[0].mxu0 %v637
      %v787 = vpop.f32.mrb[0].mxu0
      %v788 = vadd.f32 %v631, %v787
      %v789 = vpop.f32.mrb[0].mxu0
      %790 = vdwg.mxu0
      %v791 = vsub.f32 0.0, %v706
      %v792 = vsub.f32 0.0, %v708
      %v793 = vsub.f32 0.0, %v783
      %v794 = vsub.f32 0.0, %v712
      %v795 = vsub.f32 0.0, %v714
      %v796 = vsub.f32 0.0, %v788
      %v797 = vmul.f32 %v791, 1.442695
      %v798 = vpow.pop %v797
      %v799 = vmul.f32 %v792, 1.442695
      %v800 = vpow.pop %v799
      %v801 = vmul.f32 %v793, 1.442695
      %v802 = vpow.pop %v801
      %v803 = vmul.f32 %v794, 1.442695
      %v804 = vpow.pop %v803
      %v805 = vmul.f32 %v795, 1.442695
      %v806 = vpow.pop %v805
      %v807 = vmul.f32 %v796, 1.442695
      %v808 = vpow.pop %v807
      %v809 = vadd.f32 %v798, 1.0
      %v810 = vadd.f32 %v800, 1.0
      %v811 = vadd.f32 %v802, 1.0
      %v812 = vadd.f32 %v804, 1.0
      %v813 = vadd.f32 %v806, 1.0
      %v814 = vadd.f32 %v808, 1.0
      %v815 = vrcp.pop %v809
      %v816 = vrcp.pop %v810
      %v817 = vrcp.pop %v811
      %v818 = vrcp.pop %v812
      %v819 = vrcp.pop %v813
      %v820 = vrcp.pop %v814
      %v821 = vmul.f32 %v706, %v815
      %v822 = vmul.f32 %v708, %v816
      %v823 = vmul.f32 %v783, %v817
      %v824 = vmul.f32 %v712, %v818
      %v825 = vmul.f32 %v714, %v819
      %v826 = vmul.f32 %v788, %v820
      %s827 = scalar_lea.vmem %s1, 48
      %v828 = vld [vmem:[%s827] sm:$0xff]
      %v829 = vld [vmem:[%s827 + $0x8] sm:$0xff]
      %s830 = scalar_lea.vmem %s2, 48
      %v831 = vld [vmem:[%s830] sm:$0xff]
      %v832 = vld [vmem:[%s830 + $0x8] sm:$0xff]
      %834 = vset.pattern.permute.xlu0 0
      %835 = vperm.xlu0 %834, %v831
      %v836 = vpop.permute.xlu0 %835
      %839 = vset.pattern.permute.xlu0 0
      %840 = vperm.xlu0 %839, %v832
      %v841 = vpop.permute.xlu0 %840
      %v844 = vsel %vm422, %v828, 0
      %v847 = vsel %vm422, %v829, 0
      %849 = vmatprep.subr.mxu0 %v822
      %850 = vmatpush1.msra.mxu0 %v821
      %851 = vmatprep.subr.mxu0 %v825
      %852 = vmatpush1.msra.mxu0 %v824
      %853 = vmatprep.subr.mxu0 0.0
      %854 = vmatpush1.msra.mxu0 0.0
      %855 = vmatprep.subr.mxu0 0.0
      %856 = vmatpush1.msra.mxu0 0.0
      %857 = vmatprep.subr.mxu0 0.0
      %858 = vmatpush1.msra.mxu0 0.0
      %859 = vmatprep.subr.mxu0 0.0
      %860 = vmatpush1.msra.mxu0 0.0
      %861 = vmatprep.subr.mxu0 0.0
      %862 = vmatpush1.msra.mxu0 0.0
      %863 = vmatprep.subr.mxu0 0.0
      %864 = vmatpush1.msra.mxu0 0.0
      %865 = vmatprep.subr.mxu0 0.0
      %866 = vmatpush1.msra.mxu0 0.0
      %867 = vmatprep.subr.mxu0 0.0
      %868 = vmatpush1.msra.mxu0 0.0
      %869 = vmatprep.subr.mxu0 0.0
      %870 = vmatpush1.msra.mxu0 0.0
      %871 = vmatprep.subr.mxu0 0.0
      %872 = vmatpush1.msra.mxu0 0.0
      %873 = vmatprep.subr.mxu0 0.0
      %874 = vmatpush1.msra.mxu0 0.0
      %875 = vmatprep.subr.mxu0 0.0
      %876 = vmatpush1.msra.mxu0 0.0
      %877 = vmatprep.subr.mxu0 0.0
      %878 = vmatpush1.msra.mxu0 0.0
      %879 = vmatprep.subr.mxu0 0.0
      %880 = vmatpush1.msra.mxu0 0.0
      %881 = vmatprep.subr.mxu0 0.0
      %882 = vmatpush1.msra.mxu0 0.0
      %883 = vmatprep.subr.mxu0 0.0
      %884 = vmatpush1.msra.mxu0 0.0
      %885 = vmatprep.subr.mxu0 0.0
      %886 = vmatpush1.msra.mxu0 0.0
      %887 = vmatprep.subr.mxu0 0.0
      %888 = vmatpush1.msra.mxu0 0.0
      %889 = vmatprep.subr.mxu0 0.0
      %890 = vmatpush1.msra.mxu0 0.0
      %891 = vmatprep.subr.mxu0 0.0
      %892 = vmatpush1.msra.mxu0 0.0
      %893 = vmatprep.subr.mxu0 0.0
      %894 = vmatpush1.msra.mxu0 0.0
      %895 = vmatprep.subr.mxu0 0.0
      %896 = vmatpush1.msra.mxu0 0.0
      %897 = vmatprep.subr.mxu0 0.0
      %898 = vmatpush1.msra.mxu0 0.0
      %899 = vmatprep.subr.mxu0 0.0
      %900 = vmatpush1.msra.mxu0 0.0
      %901 = vmatprep.subr.mxu0 0.0
      %902 = vmatpush1.msra.mxu0 0.0
      %903 = vmatprep.subr.mxu0 0.0
      %904 = vmatpush1.msra.mxu0 0.0
      %905 = vmatprep.subr.mxu0 0.0
      %906 = vmatpush1.msra.mxu0 0.0
      %907 = vmatprep.subr.mxu0 0.0
      %908 = vmatpush1.msra.mxu0 0.0
      %909 = vmatprep.subr.mxu0 0.0
      %910 = vmatpush1.msra.mxu0 0.0
      %911 = vmatprep.subr.mxu0 0.0
      %912 = vmatpush1.msra.mxu0 0.0
      %913 = vmatprep.mubr.f32.mxu0 0.0
      %914 = vmatmul.mubr.f32.gmra.mrb[0].mxu0 %v844
      %v915 = vpop.f32.mrb[0].mxu0
      %v916 = vadd.f32 %v836, %v915
      %v917 = vpop.f32.mrb[0].mxu0
      %v918 = vadd.f32 %v836, %v917
      %919 = vmatprep.mubr.f32.mxu0 0.0
      %920 = vmatmul.mubr.f32.gmra.mrb[0].mxu0 %v847
      %v921 = vpop.f32.mrb[0].mxu0
      %v922 = vadd.f32 %v841, %v921
      %v923 = vpop.f32.mrb[0].mxu0
      %v924 = vadd.f32 %v841, %v923
      %925 = vdwg.mxu0
      %926 = vmatprep.subr.mxu0 0.0
      %927 = vmatpush1.msra.mxu0 %v823
      %928 = vmatprep.subr.mxu0 0.0
      %929 = vmatpush1.msra.mxu0 %v826
      %930 = vmatprep.subr.mxu0 0.0
      %931 = vmatpush1.msra.mxu0 0.0
      %932 = vmatprep.subr.mxu0 0.0
      %933 = vmatpush1.msra.mxu0 0.0
      %934 = vmatprep.subr.mxu0 0.0
      %935 = vmatpush1.msra.mxu0 0.0
      %936 = vmatprep.subr.mxu0 0.0
      %937 = vmatpush1.msra.mxu0 0.0
      %938 = vmatprep.subr.mxu0 0.0
      %939 = vmatpush1.msra.mxu0 0.0
      %940 = vmatprep.subr.mxu0 0.0
      %941 = vmatpush1.msra.mxu0 0.0
      %942 = vmatprep.subr.mxu0 0.0
      %943 = vmatpush1.msra.mxu0 0.0
      %944 = vmatprep.subr.mxu0 0.0
      %945 = vmatpush1.msra.mxu0 0.0
      %946 = vmatprep.subr.mxu0 0.0
      %947 = vmatpush1.msra.mxu0 0.0
      %948 = vmatprep.subr.mxu0 0.0
      %949 = vmatpush1.msra.mxu0 0.0
      %950 = vmatprep.subr.mxu0 0.0
      %951 = vmatpush1.msra.mxu0 0.0
      %952 = vmatprep.subr.mxu0 0.0
      %953 = vmatpush1.msra.mxu0 0.0
      %954 = vmatprep.subr.mxu0 0.0
      %955 = vmatpush1.msra.mxu0 0.0
      %956 = vmatprep.subr.mxu0 0.0
      %957 = vmatpush1.msra.mxu0 0.0
      %958 = vmatprep.subr.mxu0 0.0
      %959 = vmatpush1.msra.mxu0 0.0
      %960 = vmatprep.subr.mxu0 0.0
      %961 = vmatpush1.msra.mxu0 0.0
      %962 = vmatprep.subr.mxu0 0.0
      %963 = vmatpush1.msra.mxu0 0.0
      %964 = vmatprep.subr.mxu0 0.0
      %965 = vmatpush1.msra.mxu0 0.0
      %966 = vmatprep.subr.mxu0 0.0
      %967 = vmatpush1.msra.mxu0 0.0
      %968 = vmatprep.subr.mxu0 0.0
      %969 = vmatpush1.msra.mxu0 0.0
      %970 = vmatprep.subr.mxu0 0.0
      %971 = vmatpush1.msra.mxu0 0.0
      %972 = vmatprep.subr.mxu0 0.0
      %973 = vmatpush1.msra.mxu0 0.0
      %974 = vmatprep.subr.mxu0 0.0
      %975 = vmatpush1.msra.mxu0 0.0
      %976 = vmatprep.subr.mxu0 0.0
      %977 = vmatpush1.msra.mxu0 0.0
      %978 = vmatprep.subr.mxu0 0.0
      %979 = vmatpush1.msra.mxu0 0.0
      %980 = vmatprep.subr.mxu0 0.0
      %981 = vmatpush1.msra.mxu0 0.0
      %982 = vmatprep.subr.mxu0 0.0
      %983 = vmatpush1.msra.mxu0 0.0
      %984 = vmatprep.subr.mxu0 0.0
      %985 = vmatpush1.msra.mxu0 0.0
      %986 = vmatprep.subr.mxu0 0.0
      %987 = vmatpush1.msra.mxu0 0.0
      %988 = vmatprep.subr.mxu0 0.0
      %989 = vmatpush1.msra.mxu0 0.0
      %990 = vmatprep.mubr.f32.mxu0 0.0
      %991 = vmatmul.mubr.f32.gmra.mrb[0].mxu0 %v844
      %v992 = vpop.f32.mrb[0].mxu0
      %v993 = vadd.f32 %v836, %v992
      %v994 = vpop.f32.mrb[0].mxu0
      %995 = vmatprep.mubr.f32.mxu0 0.0
      %996 = vmatmul.mubr.f32.gmra.mrb[0].mxu0 %v847
      %v997 = vpop.f32.mrb[0].mxu0
      %v998 = vadd.f32 %v841, %v997
      %v999 = vpop.f32.mrb[0].mxu0
      %1000 = vdwg.mxu0
      %v1001 = vsub.f32 0.0, %v916
      %v1002 = vsub.f32 0.0, %v918
      %v1003 = vsub.f32 0.0, %v993
      %v1004 = vsub.f32 0.0, %v922
      %v1005 = vsub.f32 0.0, %v924
      %v1006 = vsub.f32 0.0, %v998
      %v1007 = vmul.f32 %v1001, 1.442695
      %v1008 = vpow.pop %v1007
      %v1009 = vmul.f32 %v1002, 1.442695
      %v1010 = vpow.pop %v1009
      %v1011 = vmul.f32 %v1003, 1.442695
      %v1012 = vpow.pop %v1011
      %v1013 = vmul.f32 %v1004, 1.442695
      %v1014 = vpow.pop %v1013
      %v1015 = vmul.f32 %v1005, 1.442695
      %v1016 = vpow.pop %v1015
      %v1017 = vmul.f32 %v1006, 1.442695
      %v1018 = vpow.pop %v1017
      %v1019 = vadd.f32 %v1008, 1.0
      %v1020 = vadd.f32 %v1010, 1.0
      %v1021 = vadd.f32 %v1012, 1.0
      %v1022 = vadd.f32 %v1014, 1.0
      %v1023 = vadd.f32 %v1016, 1.0
      %v1024 = vadd.f32 %v1018, 1.0
      %v1025 = vrcp.pop %v1019
      %v1026 = vrcp.pop %v1020
      %v1027 = vrcp.pop %v1021
      %v1028 = vrcp.pop %v1022
      %v1029 = vrcp.pop %v1023
      %v1030 = vrcp.pop %v1024
      %v1031 = vmul.f32 %v916, %v1025
      %v1032 = vmul.f32 %v918, %v1026
      %v1033 = vmul.f32 %v993, %v1027
      %v1034 = vmul.f32 %v922, %v1028
      %v1035 = vmul.f32 %v924, %v1029
      %v1036 = vmul.f32 %v998, %v1030
      %s1037 = scalar_lea.vmem %s1, 64
      %v1038 = vld [vmem:[%s1037] sm:$0xff]
      %v1039 = vld [vmem:[%s1037 + $0x8] sm:$0xff]
      %s1040 = scalar_lea.vmem %s2, 64
      %v1041 = vld [vmem:[%s1040] sm:$0xff]
      %v1042 = vld [vmem:[%s1040 + $0x8] sm:$0xff]
      %1044 = vset.pattern.permute.xlu0 0
      %1045 = vperm.xlu0 %1044, %v1041
      %v1046 = vpop.permute.xlu0 %1045
      %1049 = vset.pattern.permute.xlu0 0
      %1050 = vperm.xlu0 %1049, %v1042
      %v1051 = vpop.permute.xlu0 %1050
      %v1054 = vsel %vm422, %v1038, 0
      %v1057 = vsel %vm422, %v1039, 0
      %1059 = vmatprep.subr.mxu0 %v1032
      %1060 = vmatpush1.msra.mxu0 %v1031
      %1061 = vmatprep.subr.mxu0 %v1035
      %1062 = vmatpush1.msra.mxu0 %v1034
      %1063 = vmatprep.subr.mxu0 0.0
      %1064 = vmatpush1.msra.mxu0 0.0
      %1065 = vmatprep.subr.mxu0 0.0
      %1066 = vmatpush1.msra.mxu0 0.0
      %1067 = vmatprep.subr.mxu0 0.0
      %1068 = vmatpush1.msra.mxu0 0.0
      %1069 = vmatprep.subr.mxu0 0.0
      %1070 = vmatpush1.msra.mxu0 0.0
      %1071 = vmatprep.subr.mxu0 0.0
      %1072 = vmatpush1.msra.mxu0 0.0
      %1073 = vmatprep.subr.mxu0 0.0
      %1074 = vmatpush1.msra.mxu0 0.0
      %1075 = vmatprep.subr.mxu0 0.0
      %1076 = vmatpush1.msra.mxu0 0.0
      %1077 = vmatprep.subr.mxu0 0.0
      %1078 = vmatpush1.msra.mxu0 0.0
      %1079 = vmatprep.subr.mxu0 0.0
      %1080 = vmatpush1.msra.mxu0 0.0
      %1081 = vmatprep.subr.mxu0 0.0
      %1082 = vmatpush1.msra.mxu0 0.0
      %1083 = vmatprep.subr.mxu0 0.0
      %1084 = vmatpush1.msra.mxu0 0.0
      %1085 = vmatprep.subr.mxu0 0.0
      %1086 = vmatpush1.msra.mxu0 0.0
      %1087 = vmatprep.subr.mxu0 0.0
      %1088 = vmatpush1.msra.mxu0 0.0
      %1089 = vmatprep.subr.mxu0 0.0
      %1090 = vmatpush1.msra.mxu0 0.0
      %1091 = vmatprep.subr.mxu0 0.0
      %1092 = vmatpush1.msra.mxu0 0.0
      %1093 = vmatprep.subr.mxu0 0.0
      %1094 = vmatpush1.msra.mxu0 0.0
      %1095 = vmatprep.subr.mxu0 0.0
      %1096 = vmatpush1.msra.mxu0 0.0
      %1097 = vmatprep.subr.mxu0 0.0
      %1098 = vmatpush1.msra.mxu0 0.0
      %1099 = vmatprep.subr.mxu0 0.0
      %1100 = vmatpush1.msra.mxu0 0.0
      %1101 = vmatprep.subr.mxu0 0.0
      %1102 = vmatpush1.msra.mxu0 0.0
      %1103 = vmatprep.subr.mxu0 0.0
      %1104 = vmatpush1.msra.mxu0 0.0
      %1105 = vmatprep.subr.mxu0 0.0
      %1106 = vmatpush1.msra.mxu0 0.0
      %1107 = vmatprep.subr.mxu0 0.0
      %1108 = vmatpush1.msra.mxu0 0.0
      %1109 = vmatprep.subr.mxu0 0.0
      %1110 = vmatpush1.msra.mxu0 0.0
      %1111 = vmatprep.subr.mxu0 0.0
      %1112 = vmatpush1.msra.mxu0 0.0
      %1113 = vmatprep.subr.mxu0 0.0
      %1114 = vmatpush1.msra.mxu0 0.0
      %1115 = vmatprep.subr.mxu0 0.0
      %1116 = vmatpush1.msra.mxu0 0.0
      %1117 = vmatprep.subr.mxu0 0.0
      %1118 = vmatpush1.msra.mxu0 0.0
      %1119 = vmatprep.subr.mxu0 0.0
      %1120 = vmatpush1.msra.mxu0 0.0
      %1121 = vmatprep.subr.mxu0 0.0
      %1122 = vmatpush1.msra.mxu0 0.0
      %1123 = vmatprep.mubr.f32.mxu0 0.0
      %1124 = vmatmul.mubr.f32.gmra.mrb[0].mxu0 %v1054
      %v1125 = vpop.f32.mrb[0].mxu0
      %v1126 = vadd.f32 %v1046, %v1125
      %v1127 = vpop.f32.mrb[0].mxu0
      %v1128 = vadd.f32 %v1046, %v1127
      %1129 = vmatprep.mubr.f32.mxu0 0.0
      %1130 = vmatmul.mubr.f32.gmra.mrb[0].mxu0 %v1057
      %v1131 = vpop.f32.mrb[0].mxu0
      %v1132 = vadd.f32 %v1051, %v1131
      %v1133 = vpop.f32.mrb[0].mxu0
      %v1134 = vadd.f32 %v1051, %v1133
      %1135 = vdwg.mxu0
      %1136 = vmatprep.subr.mxu0 0.0
      %1137 = vmatpush1.msra.mxu0 %v1033
      %1138 = vmatprep.subr.mxu0 0.0
      %1139 = vmatpush1.msra.mxu0 %v1036
      %1140 = vmatprep.subr.mxu0 0.0
      %1141 = vmatpush1.msra.mxu0 0.0
      %1142 = vmatprep.subr.mxu0 0.0
      %1143 = vmatpush1.msra.mxu0 0.0
      %1144 = vmatprep.subr.mxu0 0.0
      %1145 = vmatpush1.msra.mxu0 0.0
      %1146 = vmatprep.subr.mxu0 0.0
      %1147 = vmatpush1.msra.mxu0 0.0
      %1148 = vmatprep.subr.mxu0 0.0
      %1149 = vmatpush1.msra.mxu0 0.0
      %1150 = vmatprep.subr.mxu0 0.0
      %1151 = vmatpush1.msra.mxu0 0.0
      %1152 = vmatprep.subr.mxu0 0.0
      %1153 = vmatpush1.msra.mxu0 0.0
      %1154 = vmatprep.subr.mxu0 0.0
      %1155 = vmatpush1.msra.mxu0 0.0
      %1156 = vmatprep.subr.mxu0 0.0
      %1157 = vmatpush1.msra.mxu0 0.0
      %1158 = vmatprep.subr.mxu0 0.0
      %1159 = vmatpush1.msra.mxu0 0.0
      %1160 = vmatprep.subr.mxu0 0.0
      %1161 = vmatpush1.msra.mxu0 0.0
      %1162 = vmatprep.subr.mxu0 0.0
      %1163 = vmatpush1.msra.mxu0 0.0
      %1164 = vmatprep.subr.mxu0 0.0
      %1165 = vmatpush1.msra.mxu0 0.0
      %1166 = vmatprep.subr.mxu0 0.0
      %1167 = vmatpush1.msra.mxu0 0.0
      %1168 = vmatprep.subr.mxu0 0.0
      %1169 = vmatpush1.msra.mxu0 0.0
      %1170 = vmatprep.subr.mxu0 0.0
      %1171 = vmatpush1.msra.mxu0 0.0
      %1172 = vmatprep.subr.mxu0 0.0
      %1173 = vmatpush1.msra.mxu0 0.0
      %1174 = vmatprep.subr.mxu0 0.0
      %1175 = vmatpush1.msra.mxu0 0.0
      %1176 = vmatprep.subr.mxu0 0.0
      %1177 = vmatpush1.msra.mxu0 0.0
      %1178 = vmatprep.subr.mxu0 0.0
      %1179 = vmatpush1.msra.mxu0 0.0
      %1180 = vmatprep.subr.mxu0 0.0
      %1181 = vmatpush1.msra.mxu0 0.0
      %1182 = vmatprep.subr.mxu0 0.0
      %1183 = vmatpush1.msra.mxu0 0.0
      %1184 = vmatprep.subr.mxu0 0.0
      %1185 = vmatpush1.msra.mxu0 0.0
      %1186 = vmatprep.subr.mxu0 0.0
      %1187 = vmatpush1.msra.mxu0 0.0
      %1188 = vmatprep.subr.mxu0 0.0
      %1189 = vmatpush1.msra.mxu0 0.0
      %1190 = vmatprep.subr.mxu0 0.0
      %1191 = vmatpush1.msra.mxu0 0.0
      %1192 = vmatprep.subr.mxu0 0.0
      %1193 = vmatpush1.msra.mxu0 0.0
      %1194 = vmatprep.subr.mxu0 0.0
      %1195 = vmatpush1.msra.mxu0 0.0
      %1196 = vmatprep.subr.mxu0 0.0
      %1197 = vmatpush1.msra.mxu0 0.0
      %1198 = vmatprep.subr.mxu0 0.0
      %1199 = vmatpush1.msra.mxu0 0.0
      %1200 = vmatprep.mubr.f32.mxu0 0.0
      %1201 = vmatmul.mubr.f32.gmra.mrb[0].mxu0 %v1054
      %v1202 = vpop.f32.mrb[0].mxu0
      %v1203 = vadd.f32 %v1046, %v1202
      %v1204 = vpop.f32.mrb[0].mxu0
      %1205 = vmatprep.mubr.f32.mxu0 0.0
      %1206 = vmatmul.mubr.f32.gmra.mrb[0].mxu0 %v1057
      %v1207 = vpop.f32.mrb[0].mxu0
      %v1208 = vadd.f32 %v1051, %v1207
      %v1209 = vpop.f32.mrb[0].mxu0
      %1210 = vdwg.mxu0
      %v1211 = vsub.f32 0.0, %v1126
      %v1212 = vsub.f32 0.0, %v1128
      %v1213 = vsub.f32 0.0, %v1203
      %v1214 = vsub.f32 0.0, %v1132
      %v1215 = vsub.f32 0.0, %v1134
      %v1216 = vsub.f32 0.0, %v1208
      %v1217 = vmul.f32 %v1211, 1.442695
      %v1218 = vpow.pop %v1217
      %v1219 = vmul.f32 %v1212, 1.442695
      %v1220 = vpow.pop %v1219
      %v1221 = vmul.f32 %v1213, 1.442695
      %v1222 = vpow.pop %v1221
      %v1223 = vmul.f32 %v1214, 1.442695
      %v1224 = vpow.pop %v1223
      %v1225 = vmul.f32 %v1215, 1.442695
      %v1226 = vpow.pop %v1225
      %v1227 = vmul.f32 %v1216, 1.442695
      %v1228 = vpow.pop %v1227
      %v1229 = vadd.f32 %v1218, 1.0
      %v1230 = vadd.f32 %v1220, 1.0
      %v1231 = vadd.f32 %v1222, 1.0
      %v1232 = vadd.f32 %v1224, 1.0
      %v1233 = vadd.f32 %v1226, 1.0
      %v1234 = vadd.f32 %v1228, 1.0
      %v1235 = vrcp.pop %v1229
      %v1236 = vrcp.pop %v1230
      %v1237 = vrcp.pop %v1231
      %v1238 = vrcp.pop %v1232
      %v1239 = vrcp.pop %v1233
      %v1240 = vrcp.pop %v1234
      %v1241 = vmul.f32 %v1126, %v1235
      %v1242 = vmul.f32 %v1128, %v1236
      %v1243 = vmul.f32 %v1203, %v1237
      %v1244 = vmul.f32 %v1132, %v1238
      %v1245 = vmul.f32 %v1134, %v1239
      %v1246 = vmul.f32 %v1208, %v1240
      %s1247 = scalar_lea.vmem %s1, 80
      %v1248 = vld [vmem:[%s1247] sm:$0xff]
      %v1249 = vld [vmem:[%s1247 + $0x8] sm:$0xff]
      %s1250 = scalar_lea.vmem %s2, 80
      %v1251 = vld [vmem:[%s1250] sm:$0xff]
      %v1252 = vld [vmem:[%s1250 + $0x8] sm:$0xff]
      %1254 = vset.pattern.permute.xlu0 0
      %1255 = vperm.xlu0 %1254, %v1251
      %v1256 = vpop.permute.xlu0 %1255
      %1259 = vset.pattern.permute.xlu0 0
      %1260 = vperm.xlu0 %1259, %v1252
      %v1261 = vpop.permute.xlu0 %1260
      %v1264 = vsel %vm422, %v1248, 0
      %v1267 = vsel %vm422, %v1249, 0
      %1269 = vmatprep.subr.mxu0 %v1242
      %1270 = vmatpush1.msra.mxu0 %v1241
      %1271 = vmatprep.subr.mxu0 %v1245
      %1272 = vmatpush1.msra.mxu0 %v1244
      %1273 = vmatprep.subr.mxu0 0.0
      %1274 = vmatpush1.msra.mxu0 0.0
      %1275 = vmatprep.subr.mxu0 0.0
      %1276 = vmatpush1.msra.mxu0 0.0
      %1277 = vmatprep.subr.mxu0 0.0
      %1278 = vmatpush1.msra.mxu0 0.0
      %1279 = vmatprep.subr.mxu0 0.0
      %1280 = vmatpush1.msra.mxu0 0.0
      %1281 = vmatprep.subr.mxu0 0.0
      %1282 = vmatpush1.msra.mxu0 0.0
      %1283 = vmatprep.subr.mxu0 0.0
      %1284 = vmatpush1.msra.mxu0 0.0
      %1285 = vmatprep.subr.mxu0 0.0
      %1286 = vmatpush1.msra.mxu0 0.0
      %1287 = vmatprep.subr.mxu0 0.0
      %1288 = vmatpush1.msra.mxu0 0.0
      %1289 = vmatprep.subr.mxu0 0.0
      %1290 = vmatpush1.msra.mxu0 0.0
      %1291 = vmatprep.subr.mxu0 0.0
      %1292 = vmatpush1.msra.mxu0 0.0
      %1293 = vmatprep.subr.mxu0 0.0
      %1294 = vmatpush1.msra.mxu0 0.0
      %1295 = vmatprep.subr.mxu0 0.0
      %1296 = vmatpush1.msra.mxu0 0.0
      %1297 = vmatprep.subr.mxu0 0.0
      %1298 = vmatpush1.msra.mxu0 0.0
      %1299 = vmatprep.subr.mxu0 0.0
      %1300 = vmatpush1.msra.mxu0 0.0
      %1301 = vmatprep.subr.mxu0 0.0
      %1302 = vmatpush1.msra.mxu0 0.0
      %1303 = vmatprep.subr.mxu0 0.0
      %1304 = vmatpush1.msra.mxu0 0.0
      %1305 = vmatprep.subr.mxu0 0.0
      %1306 = vmatpush1.msra.mxu0 0.0
      %1307 = vmatprep.subr.mxu0 0.0
      %1308 = vmatpush1.msra.mxu0 0.0
      %1309 = vmatprep.subr.mxu0 0.0
      %1310 = vmatpush1.msra.mxu0 0.0
      %1311 = vmatprep.subr.mxu0 0.0
      %1312 = vmatpush1.msra.mxu0 0.0
      %1313 = vmatprep.subr.mxu0 0.0
      %1314 = vmatpush1.msra.mxu0 0.0
      %1315 = vmatprep.subr.mxu0 0.0
      %1316 = vmatpush1.msra.mxu0 0.0
      %1317 = vmatprep.subr.mxu0 0.0
      %1318 = vmatpush1.msra.mxu0 0.0
      %1319 = vmatprep.subr.mxu0 0.0
      %1320 = vmatpush1.msra.mxu0 0.0
      %1321 = vmatprep.subr.mxu0 0.0
      %1322 = vmatpush1.msra.mxu0 0.0
      %1323 = vmatprep.subr.mxu0 0.0
      %1324 = vmatpush1.msra.mxu0 0.0
      %1325 = vmatprep.subr.mxu0 0.0
      %1326 = vmatpush1.msra.mxu0 0.0
      %1327 = vmatprep.subr.mxu0 0.0
      %1328 = vmatpush1.msra.mxu0 0.0
      %1329 = vmatprep.subr.mxu0 0.0
      %1330 = vmatpush1.msra.mxu0 0.0
      %1331 = vmatprep.subr.mxu0 0.0
      %1332 = vmatpush1.msra.mxu0 0.0
      %1333 = vmatprep.mubr.f32.mxu0 0.0
      %1334 = vmatmul.mubr.f32.gmra.mrb[0].mxu0 %v1264
      %v1335 = vpop.f32.mrb[0].mxu0
      %v1336 = vadd.f32 %v1256, %v1335
      %v1337 = vpop.f32.mrb[0].mxu0
      %v1338 = vadd.f32 %v1256, %v1337
      %1339 = vmatprep.mubr.f32.mxu0 0.0
      %1340 = vmatmul.mubr.f32.gmra.mrb[0].mxu0 %v1267
      %v1341 = vpop.f32.mrb[0].mxu0
      %v1342 = vadd.f32 %v1261, %v1341
      %v1343 = vpop.f32.mrb[0].mxu0
      %v1344 = vadd.f32 %v1261, %v1343
      %1345 = vdwg.mxu0
      %1346 = vmatprep.subr.mxu0 0.0
      %1347 = vmatpush1.msra.mxu0 %v1243
      %1348 = vmatprep.subr.mxu0 0.0
      %1349 = vmatpush1.msra.mxu0 %v1246
      %1350 = vmatprep.subr.mxu0 0.0
      %1351 = vmatpush1.msra.mxu0 0.0
      %1352 = vmatprep.subr.mxu0 0.0
      %1353 = vmatpush1.msra.mxu0 0.0
      %1354 = vmatprep.subr.mxu0 0.0
      %1355 = vmatpush1.msra.mxu0 0.0
      %1356 = vmatprep.subr.mxu0 0.0
      %1357 = vmatpush1.msra.mxu0 0.0
      %1358 = vmatprep.subr.mxu0 0.0
      %1359 = vmatpush1.msra.mxu0 0.0
      %1360 = vmatprep.subr.mxu0 0.0
      %1361 = vmatpush1.msra.mxu0 0.0
      %1362 = vmatprep.subr.mxu0 0.0
      %1363 = vmatpush1.msra.mxu0 0.0
      %1364 = vmatprep.subr.mxu0 0.0
      %1365 = vmatpush1.msra.mxu0 0.0
      %1366 = vmatprep.subr.mxu0 0.0
      %1367 = vmatpush1.msra.mxu0 0.0
      %1368 = vmatprep.subr.mxu0 0.0
      %1369 = vmatpush1.msra.mxu0 0.0
      %1370 = vmatprep.subr.mxu0 0.0
      %1371 = vmatpush1.msra.mxu0 0.0
      %1372 = vmatprep.subr.mxu0 0.0
      %1373 = vmatpush1.msra.mxu0 0.0
      %1374 = vmatprep.subr.mxu0 0.0
      %1375 = vmatpush1.msra.mxu0 0.0
      %1376 = vmatprep.subr.mxu0 0.0
      %1377 = vmatpush1.msra.mxu0 0.0
      %1378 = vmatprep.subr.mxu0 0.0
      %1379 = vmatpush1.msra.mxu0 0.0
      %1380 = vmatprep.subr.mxu0 0.0
      %1381 = vmatpush1.msra.mxu0 0.0
      %1382 = vmatprep.subr.mxu0 0.0
      %1383 = vmatpush1.msra.mxu0 0.0
      %1384 = vmatprep.subr.mxu0 0.0
      %1385 = vmatpush1.msra.mxu0 0.0
      %1386 = vmatprep.subr.mxu0 0.0
      %1387 = vmatpush1.msra.mxu0 0.0
      %1388 = vmatprep.subr.mxu0 0.0
      %1389 = vmatpush1.msra.mxu0 0.0
      %1390 = vmatprep.subr.mxu0 0.0
      %1391 = vmatpush1.msra.mxu0 0.0
      %1392 = vmatprep.subr.mxu0 0.0
      %1393 = vmatpush1.msra.mxu0 0.0
      %1394 = vmatprep.subr.mxu0 0.0
      %1395 = vmatpush1.msra.mxu0 0.0
      %1396 = vmatprep.subr.mxu0 0.0
      %1397 = vmatpush1.msra.mxu0 0.0
      %1398 = vmatprep.subr.mxu0 0.0
      %1399 = vmatpush1.msra.mxu0 0.0
      %1400 = vmatprep.subr.mxu0 0.0
      %1401 = vmatpush1.msra.mxu0 0.0
      %1402 = vmatprep.subr.mxu0 0.0
      %1403 = vmatpush1.msra.mxu0 0.0
      %1404 = vmatprep.subr.mxu0 0.0
      %1405 = vmatpush1.msra.mxu0 0.0
      %1406 = vmatprep.subr.mxu0 0.0
      %1407 = vmatpush1.msra.mxu0 0.0
      %1408 = vmatprep.subr.mxu0 0.0
      %1409 = vmatpush1.msra.mxu0 0.0
      %1410 = vmatprep.mubr.f32.mxu0 0.0
      %1411 = vmatmul.mubr.f32.gmra.mrb[0].mxu0 %v1264
      %v1412 = vpop.f32.mrb[0].mxu0
      %v1413 = vadd.f32 %v1256, %v1412
      %v1414 = vpop.f32.mrb[0].mxu0
      %1415 = vmatprep.mubr.f32.mxu0 0.0
      %1416 = vmatmul.mubr.f32.gmra.mrb[0].mxu0 %v1267
      %v1417 = vpop.f32.mrb[0].mxu0
      %v1418 = vadd.f32 %v1261, %v1417
      %v1419 = vpop.f32.mrb[0].mxu0
      %1420 = vdwg.mxu0
      %v1421 = vsub.f32 0.0, %v1336
      %v1422 = vsub.f32 0.0, %v1338
      %v1423 = vsub.f32 0.0, %v1413
      %v1424 = vsub.f32 0.0, %v1342
      %v1425 = vsub.f32 0.0, %v1344
      %v1426 = vsub.f32 0.0, %v1418
      %v1427 = vmul.f32 %v1421, 1.442695
      %v1428 = vpow.pop %v1427
      %v1429 = vmul.f32 %v1422, 1.442695
      %v1430 = vpow.pop %v1429
      %v1431 = vmul.f32 %v1423, 1.442695
      %v1432 = vpow.pop %v1431
      %v1433 = vmul.f32 %v1424, 1.442695
      %v1434 = vpow.pop %v1433
      %v1435 = vmul.f32 %v1425, 1.442695
      %v1436 = vpow.pop %v1435
      %v1437 = vmul.f32 %v1426, 1.442695
      %v1438 = vpow.pop %v1437
      %v1439 = vadd.f32 %v1428, 1.0
      %v1440 = vadd.f32 %v1430, 1.0
      %v1441 = vadd.f32 %v1432, 1.0
      %v1442 = vadd.f32 %v1434, 1.0
      %v1443 = vadd.f32 %v1436, 1.0
      %v1444 = vadd.f32 %v1438, 1.0
      %v1445 = vrcp.pop %v1439
      %v1446 = vrcp.pop %v1440
      %v1447 = vrcp.pop %v1441
      %v1448 = vrcp.pop %v1442
      %v1449 = vrcp.pop %v1443
      %v1450 = vrcp.pop %v1444
      %v1451 = vmul.f32 %v1336, %v1445
      %v1452 = vmul.f32 %v1338, %v1446
      %v1453 = vmul.f32 %v1413, %v1447
      %v1454 = vmul.f32 %v1342, %v1448
      %v1455 = vmul.f32 %v1344, %v1449
      %v1456 = vmul.f32 %v1418, %v1450
      %s1457 = scalar_lea.vmem %s1, 96
      %v1458 = vld [vmem:[%s1457] sm:$0xff]
      %v1459 = vld [vmem:[%s1457 + $0x8] sm:$0xff]
      %s1460 = scalar_lea.vmem %s2, 96
      %v1461 = vld [vmem:[%s1460] sm:$0xff]
      %v1462 = vld [vmem:[%s1460 + $0x8] sm:$0xff]
      %1464 = vset.pattern.permute.xlu0 0
      %1465 = vperm.xlu0 %1464, %v1461
      %v1466 = vpop.permute.xlu0 %1465
      %1469 = vset.pattern.permute.xlu0 0
      %1470 = vperm.xlu0 %1469, %v1462
      %v1471 = vpop.permute.xlu0 %1470
      %v1474 = vsel %vm422, %v1458, 0
      %v1477 = vsel %vm422, %v1459, 0
      %1479 = vmatprep.subr.mxu0 %v1452
      %1480 = vmatpush1.msra.mxu0 %v1451
      %1481 = vmatprep.subr.mxu0 %v1455
      %1482 = vmatpush1.msra.mxu0 %v1454
      %1483 = vmatprep.subr.mxu0 0.0
      %1484 = vmatpush1.msra.mxu0 0.0
      %1485 = vmatprep.subr.mxu0 0.0
      %1486 = vmatpush1.msra.mxu0 0.0
      %1487 = vmatprep.subr.mxu0 0.0
      %1488 = vmatpush1.msra.mxu0 0.0
      %1489 = vmatprep.subr.mxu0 0.0
      %1490 = vmatpush1.msra.mxu0 0.0
      %1491 = vmatprep.subr.mxu0 0.0
      %1492 = vmatpush1.msra.mxu0 0.0
      %1493 = vmatprep.subr.mxu0 0.0
      %1494 = vmatpush1.msra.mxu0 0.0
      %1495 = vmatprep.subr.mxu0 0.0
      %1496 = vmatpush1.msra.mxu0 0.0
      %1497 = vmatprep.subr.mxu0 0.0
      %1498 = vmatpush1.msra.mxu0 0.0
      %1499 = vmatprep.subr.mxu0 0.0
      %1500 = vmatpush1.msra.mxu0 0.0
      %1501 = vmatprep.subr.mxu0 0.0
      %1502 = vmatpush1.msra.mxu0 0.0
      %1503 = vmatprep.subr.mxu0 0.0
      %1504 = vmatpush1.msra.mxu0 0.0
      %1505 = vmatprep.subr.mxu0 0.0
      %1506 = vmatpush1.msra.mxu0 0.0
      %1507 = vmatprep.subr.mxu0 0.0
      %1508 = vmatpush1.msra.mxu0 0.0
      %1509 = vmatprep.subr.mxu0 0.0
      %1510 = vmatpush1.msra.mxu0 0.0
      %1511 = vmatprep.subr.mxu0 0.0
      %1512 = vmatpush1.msra.mxu0 0.0
      %1513 = vmatprep.subr.mxu0 0.0
      %1514 = vmatpush1.msra.mxu0 0.0
      %1515 = vmatprep.subr.mxu0 0.0
      %1516 = vmatpush1.msra.mxu0 0.0
      %1517 = vmatprep.subr.mxu0 0.0
      %1518 = vmatpush1.msra.mxu0 0.0
      %1519 = vmatprep.subr.mxu0 0.0
      %1520 = vmatpush1.msra.mxu0 0.0
      %1521 = vmatprep.subr.mxu0 0.0
      %1522 = vmatpush1.msra.mxu0 0.0
      %1523 = vmatprep.subr.mxu0 0.0
      %1524 = vmatpush1.msra.mxu0 0.0
      %1525 = vmatprep.subr.mxu0 0.0
      %1526 = vmatpush1.msra.mxu0 0.0
      %1527 = vmatprep.subr.mxu0 0.0
      %1528 = vmatpush1.msra.mxu0 0.0
      %1529 = vmatprep.subr.mxu0 0.0
      %1530 = vmatpush1.msra.mxu0 0.0
      %1531 = vmatprep.subr.mxu0 0.0
      %1532 = vmatpush1.msra.mxu0 0.0
      %1533 = vmatprep.subr.mxu0 0.0
      %1534 = vmatpush1.msra.mxu0 0.0
      %1535 = vmatprep.subr.mxu0 0.0
      %1536 = vmatpush1.msra.mxu0 0.0
      %1537 = vmatprep.subr.mxu0 0.0
      %1538 = vmatpush1.msra.mxu0 0.0
      %1539 = vmatprep.subr.mxu0 0.0
      %1540 = vmatpush1.msra.mxu0 0.0
      %1541 = vmatprep.subr.mxu0 0.0
      %1542 = vmatpush1.msra.mxu0 0.0
      %1543 = vmatprep.mubr.f32.mxu0 0.0
      %1544 = vmatmul.mubr.f32.gmra.mrb[0].mxu0 %v1474
      %v1545 = vpop.f32.mrb[0].mxu0
      %v1546 = vadd.f32 %v1466, %v1545
      %v1547 = vpop.f32.mrb[0].mxu0
      %v1548 = vadd.f32 %v1466, %v1547
      %1549 = vmatprep.mubr.f32.mxu0 0.0
      %1550 = vmatmul.mubr.f32.gmra.mrb[0].mxu0 %v1477
      %v1551 = vpop.f32.mrb[0].mxu0
      %v1552 = vadd.f32 %v1471, %v1551
      %v1553 = vpop.f32.mrb[0].mxu0
      %v1554 = vadd.f32 %v1471, %v1553
      %1555 = vdwg.mxu0
      %1556 = vmatprep.subr.mxu0 0.0
      %1557 = vmatpush1.msra.mxu0 %v1453
      %1558 = vmatprep.subr.mxu0 0.0
      %1559 = vmatpush1.msra.mxu0 %v1456
      %1560 = vmatprep.subr.mxu0 0.0
      %1561 = vmatpush1.msra.mxu0 0.0
      %1562 = vmatprep.subr.mxu0 0.0
      %1563 = vmatpush1.msra.mxu0 0.0
      %1564 = vmatprep.subr.mxu0 0.0
      %1565 = vmatpush1.msra.mxu0 0.0
      %1566 = vmatprep.subr.mxu0 0.0
      %1567 = vmatpush1.msra.mxu0 0.0
      %1568 = vmatprep.subr.mxu0 0.0
      %1569 = vmatpush1.msra.mxu0 0.0
      %1570 = vmatprep.subr.mxu0 0.0
      %1571 = vmatpush1.msra.mxu0 0.0
      %1572 = vmatprep.subr.mxu0 0.0
      %1573 = vmatpush1.msra.mxu0 0.0
      %1574 = vmatprep.subr.mxu0 0.0
      %1575 = vmatpush1.msra.mxu0 0.0
      %1576 = vmatprep.subr.mxu0 0.0
      %1577 = vmatpush1.msra.mxu0 0.0
      %1578 = vmatprep.subr.mxu0 0.0
      %1579 = vmatpush1.msra.mxu0 0.0
      %1580 = vmatprep.subr.mxu0 0.0
      %1581 = vmatpush1.msra.mxu0 0.0
      %1582 = vmatprep.subr.mxu0 0.0
      %1583 = vmatpush1.msra.mxu0 0.0
      %1584 = vmatprep.subr.mxu0 0.0
      %1585 = vmatpush1.msra.mxu0 0.0
      %1586 = vmatprep.subr.mxu0 0.0
      %1587 = vmatpush1.msra.mxu0 0.0
      %1588 = vmatprep.subr.mxu0 0.0
      %1589 = vmatpush1.msra.mxu0 0.0
      %1590 = vmatprep.subr.mxu0 0.0
      %1591 = vmatpush1.msra.mxu0 0.0
      %1592 = vmatprep.subr.mxu0 0.0
      %1593 = vmatpush1.msra.mxu0 0.0
      %1594 = vmatprep.subr.mxu0 0.0
      %1595 = vmatpush1.msra.mxu0 0.0
      %1596 = vmatprep.subr.mxu0 0.0
      %1597 = vmatpush1.msra.mxu0 0.0
      %1598 = vmatprep.subr.mxu0 0.0
      %1599 = vmatpush1.msra.mxu0 0.0
      %1600 = vmatprep.subr.mxu0 0.0
      %1601 = vmatpush1.msra.mxu0 0.0
      %1602 = vmatprep.subr.mxu0 0.0
      %1603 = vmatpush1.msra.mxu0 0.0
      %1604 = vmatprep.subr.mxu0 0.0
      %1605 = vmatpush1.msra.mxu0 0.0
      %1606 = vmatprep.subr.mxu0 0.0
      %1607 = vmatpush1.msra.mxu0 0.0
      %1608 = vmatprep.subr.mxu0 0.0
      %1609 = vmatpush1.msra.mxu0 0.0
      %1610 = vmatprep.subr.mxu0 0.0
      %1611 = vmatpush1.msra.mxu0 0.0
      %1612 = vmatprep.subr.mxu0 0.0
      %1613 = vmatpush1.msra.mxu0 0.0
      %1614 = vmatprep.subr.mxu0 0.0
      %1615 = vmatpush1.msra.mxu0 0.0
      %1616 = vmatprep.subr.mxu0 0.0
      %1617 = vmatpush1.msra.mxu0 0.0
      %1618 = vmatprep.subr.mxu0 0.0
      %1619 = vmatpush1.msra.mxu0 0.0
      %1620 = vmatprep.mubr.f32.mxu0 0.0
      %1621 = vmatmul.mubr.f32.gmra.mrb[0].mxu0 %v1474
      %v1622 = vpop.f32.mrb[0].mxu0
      %v1623 = vadd.f32 %v1466, %v1622
      %v1624 = vpop.f32.mrb[0].mxu0
      %1625 = vmatprep.mubr.f32.mxu0 0.0
      %1626 = vmatmul.mubr.f32.gmra.mrb[0].mxu0 %v1477
      %v1627 = vpop.f32.mrb[0].mxu0
      %v1628 = vadd.f32 %v1471, %v1627
      %v1629 = vpop.f32.mrb[0].mxu0
      %1630 = vdwg.mxu0
      %v1631 = vsub.f32 0.0, %v1546
      %v1632 = vsub.f32 0.0, %v1548
      %v1633 = vsub.f32 0.0, %v1623
      %v1634 = vsub.f32 0.0, %v1552
      %v1635 = vsub.f32 0.0, %v1554
      %v1636 = vsub.f32 0.0, %v1628
      %v1637 = vmul.f32 %v1631, 1.442695
      %v1638 = vpow.pop %v1637
      %v1639 = vmul.f32 %v1632, 1.442695
      %v1640 = vpow.pop %v1639
      %v1641 = vmul.f32 %v1633, 1.442695
      %v1642 = vpow.pop %v1641
      %v1643 = vmul.f32 %v1634, 1.442695
      %v1644 = vpow.pop %v1643
      %v1645 = vmul.f32 %v1635, 1.442695
      %v1646 = vpow.pop %v1645
      %v1647 = vmul.f32 %v1636, 1.442695
      %v1648 = vpow.pop %v1647
      %v1649 = vadd.f32 %v1638, 1.0
      %v1650 = vadd.f32 %v1640, 1.0
      %v1651 = vadd.f32 %v1642, 1.0
      %v1652 = vadd.f32 %v1644, 1.0
      %v1653 = vadd.f32 %v1646, 1.0
      %v1654 = vadd.f32 %v1648, 1.0
      %v1655 = vrcp.pop %v1649
      %v1656 = vrcp.pop %v1650
      %v1657 = vrcp.pop %v1651
      %v1658 = vrcp.pop %v1652
      %v1659 = vrcp.pop %v1653
      %v1660 = vrcp.pop %v1654
      %v1661 = vmul.f32 %v1546, %v1655
      %v1662 = vmul.f32 %v1548, %v1656
      %v1663 = vmul.f32 %v1623, %v1657
      %v1664 = vmul.f32 %v1552, %v1658
      %v1665 = vmul.f32 %v1554, %v1659
      %v1666 = vmul.f32 %v1628, %v1660
      %s1667 = scalar_lea.vmem %s1, 112
      %v1668 = vld [vmem:[%s1667] sm:$0xff]
      %v1669 = vld [vmem:[%s1667 + $0x8] sm:$0xff]
      %s1670 = scalar_lea.vmem %s2, 112
      %v1671 = vld [vmem:[%s1670] sm:$0xff]
      %v1672 = vld [vmem:[%s1670 + $0x8] sm:$0xff]
      %1674 = vset.pattern.permute.xlu0 0
      %1675 = vperm.xlu0 %1674, %v1671
      %v1676 = vpop.permute.xlu0 %1675
      %1679 = vset.pattern.permute.xlu0 0
      %1680 = vperm.xlu0 %1679, %v1672
      %v1681 = vpop.permute.xlu0 %1680
      %v1684 = vsel %vm422, %v1668, 0
      %v1687 = vsel %vm422, %v1669, 0
      %1689 = vmatprep.subr.mxu0 %v1662
      %1690 = vmatpush1.msra.mxu0 %v1661
      %1691 = vmatprep.subr.mxu0 %v1665
      %1692 = vmatpush1.msra.mxu0 %v1664
      %1693 = vmatprep.subr.mxu0 0.0
      %1694 = vmatpush1.msra.mxu0 0.0
      %1695 = vmatprep.subr.mxu0 0.0
      %1696 = vmatpush1.msra.mxu0 0.0
      %1697 = vmatprep.subr.mxu0 0.0
      %1698 = vmatpush1.msra.mxu0 0.0
      %1699 = vmatprep.subr.mxu0 0.0
      %1700 = vmatpush1.msra.mxu0 0.0
      %1701 = vmatprep.subr.mxu0 0.0
      %1702 = vmatpush1.msra.mxu0 0.0
      %1703 = vmatprep.subr.mxu0 0.0
      %1704 = vmatpush1.msra.mxu0 0.0
      %1705 = vmatprep.subr.mxu0 0.0
      %1706 = vmatpush1.msra.mxu0 0.0
      %1707 = vmatprep.subr.mxu0 0.0
      %1708 = vmatpush1.msra.mxu0 0.0
      %1709 = vmatprep.subr.mxu0 0.0
      %1710 = vmatpush1.msra.mxu0 0.0
      %1711 = vmatprep.subr.mxu0 0.0
      %1712 = vmatpush1.msra.mxu0 0.0
      %1713 = vmatprep.subr.mxu0 0.0
      %1714 = vmatpush1.msra.mxu0 0.0
      %1715 = vmatprep.subr.mxu0 0.0
      %1716 = vmatpush1.msra.mxu0 0.0
      %1717 = vmatprep.subr.mxu0 0.0
      %1718 = vmatpush1.msra.mxu0 0.0
      %1719 = vmatprep.subr.mxu0 0.0
      %1720 = vmatpush1.msra.mxu0 0.0
      %1721 = vmatprep.subr.mxu0 0.0
      %1722 = vmatpush1.msra.mxu0 0.0
      %1723 = vmatprep.subr.mxu0 0.0
      %1724 = vmatpush1.msra.mxu0 0.0
      %1725 = vmatprep.subr.mxu0 0.0
      %1726 = vmatpush1.msra.mxu0 0.0
      %1727 = vmatprep.subr.mxu0 0.0
      %1728 = vmatpush1.msra.mxu0 0.0
      %1729 = vmatprep.subr.mxu0 0.0
      %1730 = vmatpush1.msra.mxu0 0.0
      %1731 = vmatprep.subr.mxu0 0.0
      %1732 = vmatpush1.msra.mxu0 0.0
      %1733 = vmatprep.subr.mxu0 0.0
      %1734 = vmatpush1.msra.mxu0 0.0
      %1735 = vmatprep.subr.mxu0 0.0
      %1736 = vmatpush1.msra.mxu0 0.0
      %1737 = vmatprep.subr.mxu0 0.0
      %1738 = vmatpush1.msra.mxu0 0.0
      %1739 = vmatprep.subr.mxu0 0.0
      %1740 = vmatpush1.msra.mxu0 0.0
      %1741 = vmatprep.subr.mxu0 0.0
      %1742 = vmatpush1.msra.mxu0 0.0
      %1743 = vmatprep.subr.mxu0 0.0
      %1744 = vmatpush1.msra.mxu0 0.0
      %1745 = vmatprep.subr.mxu0 0.0
      %1746 = vmatpush1.msra.mxu0 0.0
      %1747 = vmatprep.subr.mxu0 0.0
      %1748 = vmatpush1.msra.mxu0 0.0
      %1749 = vmatprep.subr.mxu0 0.0
      %1750 = vmatpush1.msra.mxu0 0.0
      %1751 = vmatprep.subr.mxu0 0.0
      %1752 = vmatpush1.msra.mxu0 0.0
      %1753 = vmatprep.mubr.f32.mxu0 0.0
      %1754 = vmatmul.mubr.f32.gmra.mrb[0].mxu0 %v1684
      %v1755 = vpop.f32.mrb[0].mxu0
      %v1756 = vadd.f32 %v1676, %v1755
      %v1757 = vpop.f32.mrb[0].mxu0
      %v1758 = vadd.f32 %v1676, %v1757
      %1759 = vmatprep.mubr.f32.mxu0 0.0
      %1760 = vmatmul.mubr.f32.gmra.mrb[0].mxu0 %v1687
      %v1761 = vpop.f32.mrb[0].mxu0
      %v1762 = vadd.f32 %v1681, %v1761
      %v1763 = vpop.f32.mrb[0].mxu0
      %v1764 = vadd.f32 %v1681, %v1763
      %1765 = vdwg.mxu0
      %1766 = vmatprep.subr.mxu0 0.0
      %1767 = vmatpush1.msra.mxu0 %v1663
      %1768 = vmatprep.subr.mxu0 0.0
      %1769 = vmatpush1.msra.mxu0 %v1666
      %1770 = vmatprep.subr.mxu0 0.0
      %1771 = vmatpush1.msra.mxu0 0.0
      %1772 = vmatprep.subr.mxu0 0.0
      %1773 = vmatpush1.msra.mxu0 0.0
      %1774 = vmatprep.subr.mxu0 0.0
      %1775 = vmatpush1.msra.mxu0 0.0
      %1776 = vmatprep.subr.mxu0 0.0
      %1777 = vmatpush1.msra.mxu0 0.0
      %1778 = vmatprep.subr.mxu0 0.0
      %1779 = vmatpush1.msra.mxu0 0.0
      %1780 = vmatprep.subr.mxu0 0.0
      %1781 = vmatpush1.msra.mxu0 0.0
      %1782 = vmatprep.subr.mxu0 0.0
      %1783 = vmatpush1.msra.mxu0 0.0
      %1784 = vmatprep.subr.mxu0 0.0
      %1785 = vmatpush1.msra.mxu0 0.0
      %1786 = vmatprep.subr.mxu0 0.0
      %1787 = vmatpush1.msra.mxu0 0.0
      %1788 = vmatprep.subr.mxu0 0.0
      %1789 = vmatpush1.msra.mxu0 0.0
      %1790 = vmatprep.subr.mxu0 0.0
      %1791 = vmatpush1.msra.mxu0 0.0
      %1792 = vmatprep.subr.mxu0 0.0
      %1793 = vmatpush1.msra.mxu0 0.0
      %1794 = vmatprep.subr.mxu0 0.0
      %1795 = vmatpush1.msra.mxu0 0.0
      %1796 = vmatprep.subr.mxu0 0.0
      %1797 = vmatpush1.msra.mxu0 0.0
      %1798 = vmatprep.subr.mxu0 0.0
      %1799 = vmatpush1.msra.mxu0 0.0
      %1800 = vmatprep.subr.mxu0 0.0
      %1801 = vmatpush1.msra.mxu0 0.0
      %1802 = vmatprep.subr.mxu0 0.0
      %1803 = vmatpush1.msra.mxu0 0.0
      %1804 = vmatprep.subr.mxu0 0.0
      %1805 = vmatpush1.msra.mxu0 0.0
      %1806 = vmatprep.subr.mxu0 0.0
      %1807 = vmatpush1.msra.mxu0 0.0
      %1808 = vmatprep.subr.mxu0 0.0
      %1809 = vmatpush1.msra.mxu0 0.0
      %1810 = vmatprep.subr.mxu0 0.0
      %1811 = vmatpush1.msra.mxu0 0.0
      %1812 = vmatprep.subr.mxu0 0.0
      %1813 = vmatpush1.msra.mxu0 0.0
      %1814 = vmatprep.subr.mxu0 0.0
      %1815 = vmatpush1.msra.mxu0 0.0
      %1816 = vmatprep.subr.mxu0 0.0
      %1817 = vmatpush1.msra.mxu0 0.0
      %1818 = vmatprep.subr.mxu0 0.0
      %1819 = vmatpush1.msra.mxu0 0.0
      %1820 = vmatprep.subr.mxu0 0.0
      %1821 = vmatpush1.msra.mxu0 0.0
      %1822 = vmatprep.subr.mxu0 0.0
      %1823 = vmatpush1.msra.mxu0 0.0
      %1824 = vmatprep.subr.mxu0 0.0
      %1825 = vmatpush1.msra.mxu0 0.0
      %1826 = vmatprep.subr.mxu0 0.0
      %1827 = vmatpush1.msra.mxu0 0.0
      %1828 = vmatprep.subr.mxu0 0.0
      %1829 = vmatpush1.msra.mxu0 0.0
      %1830 = vmatprep.mubr.f32.mxu0 0.0
      %1831 = vmatmul.mubr.f32.gmra.mrb[0].mxu0 %v1684
      %v1832 = vpop.f32.mrb[0].mxu0
      %v1833 = vadd.f32 %v1676, %v1832
      %v1834 = vpop.f32.mrb[0].mxu0
      %1835 = vmatprep.mubr.f32.mxu0 0.0
      %1836 = vmatmul.mubr.f32.gmra.mrb[0].mxu0 %v1687
      %v1837 = vpop.f32.mrb[0].mxu0
      %v1838 = vadd.f32 %v1681, %v1837
      %v1839 = vpop.f32.mrb[0].mxu0
      %1840 = vdwg.mxu0
      %v1841 = vsub.f32 0.0, %v1756
      %v1842 = vsub.f32 0.0, %v1758
      %v1843 = vsub.f32 0.0, %v1833
      %v1844 = vsub.f32 0.0, %v1762
      %v1845 = vsub.f32 0.0, %v1764
      %v1846 = vsub.f32 0.0, %v1838
      %v1847 = vmul.f32 %v1841, 1.442695
      %v1848 = vpow.pop %v1847
      %v1849 = vmul.f32 %v1842, 1.442695
      %v1850 = vpow.pop %v1849
      %v1851 = vmul.f32 %v1843, 1.442695
      %v1852 = vpow.pop %v1851
      %v1853 = vmul.f32 %v1844, 1.442695
      %v1854 = vpow.pop %v1853
      %v1855 = vmul.f32 %v1845, 1.442695
      %v1856 = vpow.pop %v1855
      %v1857 = vmul.f32 %v1846, 1.442695
      %v1858 = vpow.pop %v1857
      %v1859 = vadd.f32 %v1848, 1.0
      %v1860 = vadd.f32 %v1850, 1.0
      %v1861 = vadd.f32 %v1852, 1.0
      %v1862 = vadd.f32 %v1854, 1.0
      %v1863 = vadd.f32 %v1856, 1.0
      %v1864 = vadd.f32 %v1858, 1.0
      %v1865 = vrcp.pop %v1859
      %v1866 = vrcp.pop %v1860
      %v1867 = vrcp.pop %v1861
      %v1868 = vrcp.pop %v1862
      %v1869 = vrcp.pop %v1863
      %v1870 = vrcp.pop %v1864
      %v1871 = vmul.f32 %v1756, %v1865
      %v1872 = vmul.f32 %v1758, %v1866
      %v1873 = vmul.f32 %v1833, %v1867
      %v1874 = vmul.f32 %v1762, %v1868
      %v1875 = vmul.f32 %v1764, %v1869
      %v1876 = vmul.f32 %v1838, %v1870
      %s1877 = scalar_lea.vmem %s1, 128
      %v1878 = vld [vmem:[%s1877] sm:$0xff]
      %v1879 = vld [vmem:[%s1877 + $0x8] sm:$0xff]
      %s1880 = scalar_lea.vmem %s2, 128
      %v1881 = vld [vmem:[%s1880] sm:$0xff]
      %v1882 = vld [vmem:[%s1880 + $0x8] sm:$0xff]
      %1884 = vset.pattern.permute.xlu0 0
      %1885 = vperm.xlu0 %1884, %v1881
      %v1886 = vpop.permute.xlu0 %1885
      %1889 = vset.pattern.permute.xlu0 0
      %1890 = vperm.xlu0 %1889, %v1882
      %v1891 = vpop.permute.xlu0 %1890
      %v1894 = vsel %vm422, %v1878, 0
      %v1897 = vsel %vm422, %v1879, 0
      %1899 = vmatprep.subr.mxu0 %v1872
      %1900 = vmatpush1.msra.mxu0 %v1871
      %1901 = vmatprep.subr.mxu0 %v1875
      %1902 = vmatpush1.msra.mxu0 %v1874
      %1903 = vmatprep.subr.mxu0 0.0
      %1904 = vmatpush1.msra.mxu0 0.0
      %1905 = vmatprep.subr.mxu0 0.0
      %1906 = vmatpush1.msra.mxu0 0.0
      %1907 = vmatprep.subr.mxu0 0.0
      %1908 = vmatpush1.msra.mxu0 0.0
      %1909 = vmatprep.subr.mxu0 0.0
      %1910 = vmatpush1.msra.mxu0 0.0
      %1911 = vmatprep.subr.mxu0 0.0
      %1912 = vmatpush1.msra.mxu0 0.0
      %1913 = vmatprep.subr.mxu0 0.0
      %1914 = vmatpush1.msra.mxu0 0.0
      %1915 = vmatprep.subr.mxu0 0.0
      %1916 = vmatpush1.msra.mxu0 0.0
      %1917 = vmatprep.subr.mxu0 0.0
      %1918 = vmatpush1.msra.mxu0 0.0
      %1919 = vmatprep.subr.mxu0 0.0
      %1920 = vmatpush1.msra.mxu0 0.0
      %1921 = vmatprep.subr.mxu0 0.0
      %1922 = vmatpush1.msra.mxu0 0.0
      %1923 = vmatprep.subr.mxu0 0.0
      %1924 = vmatpush1.msra.mxu0 0.0
      %1925 = vmatprep.subr.mxu0 0.0
      %1926 = vmatpush1.msra.mxu0 0.0
      %1927 = vmatprep.subr.mxu0 0.0
      %1928 = vmatpush1.msra.mxu0 0.0
      %1929 = vmatprep.subr.mxu0 0.0
      %1930 = vmatpush1.msra.mxu0 0.0
      %1931 = vmatprep.subr.mxu0 0.0
      %1932 = vmatpush1.msra.mxu0 0.0
      %1933 = vmatprep.subr.mxu0 0.0
      %1934 = vmatpush1.msra.mxu0 0.0
      %1935 = vmatprep.subr.mxu0 0.0
      %1936 = vmatpush1.msra.mxu0 0.0
      %1937 = vmatprep.subr.mxu0 0.0
      %1938 = vmatpush1.msra.mxu0 0.0
      %1939 = vmatprep.subr.mxu0 0.0
      %1940 = vmatpush1.msra.mxu0 0.0
      %1941 = vmatprep.subr.mxu0 0.0
      %1942 = vmatpush1.msra.mxu0 0.0
      %1943 = vmatprep.subr.mxu0 0.0
      %1944 = vmatpush1.msra.mxu0 0.0
      %1945 = vmatprep.subr.mxu0 0.0
      %1946 = vmatpush1.msra.mxu0 0.0
      %1947 = vmatprep.subr.mxu0 0.0
      %1948 = vmatpush1.msra.mxu0 0.0
      %1949 = vmatprep.subr.mxu0 0.0
      %1950 = vmatpush1.msra.mxu0 0.0
      %1951 = vmatprep.subr.mxu0 0.0
      %1952 = vmatpush1.msra.mxu0 0.0
      %1953 = vmatprep.subr.mxu0 0.0
      %1954 = vmatpush1.msra.mxu0 0.0
      %1955 = vmatprep.subr.mxu0 0.0
      %1956 = vmatpush1.msra.mxu0 0.0
      %1957 = vmatprep.subr.mxu0 0.0
      %1958 = vmatpush1.msra.mxu0 0.0
      %1959 = vmatprep.subr.mxu0 0.0
      %1960 = vmatpush1.msra.mxu0 0.0
      %1961 = vmatprep.subr.mxu0 0.0
      %1962 = vmatpush1.msra.mxu0 0.0
      %1963 = vmatprep.mubr.f32.mxu0 0.0
      %1964 = vmatmul.mubr.f32.gmra.mrb[0].mxu0 %v1894
      %v1965 = vpop.f32.mrb[0].mxu0
      %v1966 = vadd.f32 %v1886, %v1965
      %v1967 = vpop.f32.mrb[0].mxu0
      %v1968 = vadd.f32 %v1886, %v1967
      %1969 = vmatprep.mubr.f32.mxu0 0.0
      %1970 = vmatmul.mubr.f32.gmra.mrb[0].mxu0 %v1897
      %v1971 = vpop.f32.mrb[0].mxu0
      %v1972 = vadd.f32 %v1891, %v1971
      %v1973 = vpop.f32.mrb[0].mxu0
      %v1974 = vadd.f32 %v1891, %v1973
      %1975 = vdwg.mxu0
      %1976 = vmatprep.subr.mxu0 0.0
      %1977 = vmatpush1.msra.mxu0 %v1873
      %1978 = vmatprep.subr.mxu0 0.0
      %1979 = vmatpush1.msra.mxu0 %v1876
      %1980 = vmatprep.subr.mxu0 0.0
      %1981 = vmatpush1.msra.mxu0 0.0
      %1982 = vmatprep.subr.mxu0 0.0
      %1983 = vmatpush1.msra.mxu0 0.0
      %1984 = vmatprep.subr.mxu0 0.0
      %1985 = vmatpush1.msra.mxu0 0.0
      %1986 = vmatprep.subr.mxu0 0.0
      %1987 = vmatpush1.msra.mxu0 0.0
      %1988 = vmatprep.subr.mxu0 0.0
      %1989 = vmatpush1.msra.mxu0 0.0
      %1990 = vmatprep.subr.mxu0 0.0
      %1991 = vmatpush1.msra.mxu0 0.0
      %1992 = vmatprep.subr.mxu0 0.0
      %1993 = vmatpush1.msra.mxu0 0.0
      %1994 = vmatprep.subr.mxu0 0.0
      %1995 = vmatpush1.msra.mxu0 0.0
      %1996 = vmatprep.subr.mxu0 0.0
      %1997 = vmatpush1.msra.mxu0 0.0
      %1998 = vmatprep.subr.mxu0 0.0
      %1999 = vmatpush1.msra.mxu0 0.0
      %2000 = vmatprep.subr.mxu0 0.0
      %2001 = vmatpush1.msra.mxu0 0.0
      %2002 = vmatprep.subr.mxu0 0.0
      %2003 = vmatpush1.msra.mxu0 0.0
      %2004 = vmatprep.subr.mxu0 0.0
      %2005 = vmatpush1.msra.mxu0 0.0
      %2006 = vmatprep.subr.mxu0 0.0
      %2007 = vmatpush1.msra.mxu0 0.0
      %2008 = vmatprep.subr.mxu0 0.0
      %2009 = vmatpush1.msra.mxu0 0.0
      %2010 = vmatprep.subr.mxu0 0.0
      %2011 = vmatpush1.msra.mxu0 0.0
      %2012 = vmatprep.subr.mxu0 0.0
      %2013 = vmatpush1.msra.mxu0 0.0
      %2014 = vmatprep.subr.mxu0 0.0
      %2015 = vmatpush1.msra.mxu0 0.0
      %2016 = vmatprep.subr.mxu0 0.0
      %2017 = vmatpush1.msra.mxu0 0.0
      %2018 = vmatprep.subr.mxu0 0.0
      %2019 = vmatpush1.msra.mxu0 0.0
      %2020 = vmatprep.subr.mxu0 0.0
      %2021 = vmatpush1.msra.mxu0 0.0
      %2022 = vmatprep.subr.mxu0 0.0
      %2023 = vmatpush1.msra.mxu0 0.0
      %2024 = vmatprep.subr.mxu0 0.0
      %2025 = vmatpush1.msra.mxu0 0.0
      %2026 = vmatprep.subr.mxu0 0.0
      %2027 = vmatpush1.msra.mxu0 0.0
      %2028 = vmatprep.subr.mxu0 0.0
      %2029 = vmatpush1.msra.mxu0 0.0
      %2030 = vmatprep.subr.mxu0 0.0
      %2031 = vmatpush1.msra.mxu0 0.0
      %2032 = vmatprep.subr.mxu0 0.0
      %2033 = vmatpush1.msra.mxu0 0.0
      %2034 = vmatprep.subr.mxu0 0.0
      %2035 = vmatpush1.msra.mxu0 0.0
      %2036 = vmatprep.subr.mxu0 0.0
      %2037 = vmatpush1.msra.mxu0 0.0
      %2038 = vmatprep.subr.mxu0 0.0
      %2039 = vmatpush1.msra.mxu0 0.0
      %2040 = vmatprep.mubr.f32.mxu0 0.0
      %2041 = vmatmul.mubr.f32.gmra.mrb[0].mxu0 %v1894
      %v2042 = vpop.f32.mrb[0].mxu0
      %v2043 = vadd.f32 %v1886, %v2042
      %v2044 = vpop.f32.mrb[0].mxu0
      %2045 = vmatprep.mubr.f32.mxu0 0.0
      %2046 = vmatmul.mubr.f32.gmra.mrb[0].mxu0 %v1897
      %v2047 = vpop.f32.mrb[0].mxu0
      %v2048 = vadd.f32 %v1891, %v2047
      %v2049 = vpop.f32.mrb[0].mxu0
      %2050 = vdwg.mxu0
      %v2051 = vsub.f32 0.0, %v1966
      %v2052 = vsub.f32 0.0, %v1968
      %v2053 = vsub.f32 0.0, %v2043
      %v2054 = vsub.f32 0.0, %v1972
      %v2055 = vsub.f32 0.0, %v1974
      %v2056 = vsub.f32 0.0, %v2048
      %v2057 = vmul.f32 %v2051, 1.442695
      %v2058 = vpow.pop %v2057
      %v2059 = vmul.f32 %v2052, 1.442695
      %v2060 = vpow.pop %v2059
      %v2061 = vmul.f32 %v2053, 1.442695
      %v2062 = vpow.pop %v2061
      %v2063 = vmul.f32 %v2054, 1.442695
      %v2064 = vpow.pop %v2063
      %v2065 = vmul.f32 %v2055, 1.442695
      %v2066 = vpow.pop %v2065
      %v2067 = vmul.f32 %v2056, 1.442695
      %v2068 = vpow.pop %v2067
      %v2069 = vadd.f32 %v2058, 1.0
      %v2070 = vadd.f32 %v2060, 1.0
      %v2071 = vadd.f32 %v2062, 1.0
      %v2072 = vadd.f32 %v2064, 1.0
      %v2073 = vadd.f32 %v2066, 1.0
      %v2074 = vadd.f32 %v2068, 1.0
      %v2075 = vrcp.pop %v2069
      %v2076 = vrcp.pop %v2070
      %v2077 = vrcp.pop %v2071
      %v2078 = vrcp.pop %v2072
      %v2079 = vrcp.pop %v2073
      %v2080 = vrcp.pop %v2074
      %v2081 = vmul.f32 %v1966, %v2075
      %v2082 = vmul.f32 %v1968, %v2076
      %v2083 = vmul.f32 %v2043, %v2077
      %v2084 = vmul.f32 %v1972, %v2078
      %v2085 = vmul.f32 %v1974, %v2079
      %v2086 = vmul.f32 %v2048, %v2080
      %s2087 = scalar_lea.vmem %s1, 144
      %v2088 = vld [vmem:[%s2087] sm:$0xff]
      %v2089 = vld [vmem:[%s2087 + $0x8] sm:$0xff]
      %s2090 = scalar_lea.vmem %s2, 144
      %v2091 = vld [vmem:[%s2090] sm:$0xff]
      %v2092 = vld [vmem:[%s2090 + $0x8] sm:$0xff]
      %2094 = vset.pattern.permute.xlu0 0
      %2095 = vperm.xlu0 %2094, %v2091
      %v2096 = vpop.permute.xlu0 %2095
      %2099 = vset.pattern.permute.xlu0 0
      %2100 = vperm.xlu0 %2099, %v2092
      %v2101 = vpop.permute.xlu0 %2100
      %v2104 = vsel %vm422, %v2088, 0
      %v2107 = vsel %vm422, %v2089, 0
      %2109 = vmatprep.subr.mxu0 %v2082
      %2110 = vmatpush1.msra.mxu0 %v2081
      %2111 = vmatprep.subr.mxu0 %v2085
      %2112 = vmatpush1.msra.mxu0 %v2084
      %2113 = vmatprep.subr.mxu0 0.0
      %2114 = vmatpush1.msra.mxu0 0.0
      %2115 = vmatprep.subr.mxu0 0.0
      %2116 = vmatpush1.msra.mxu0 0.0
      %2117 = vmatprep.subr.mxu0 0.0
      %2118 = vmatpush1.msra.mxu0 0.0
      %2119 = vmatprep.subr.mxu0 0.0
      %2120 = vmatpush1.msra.mxu0 0.0
      %2121 = vmatprep.subr.mxu0 0.0
      %2122 = vmatpush1.msra.mxu0 0.0
      %2123 = vmatprep.subr.mxu0 0.0
      %2124 = vmatpush1.msra.mxu0 0.0
      %2125 = vmatprep.subr.mxu0 0.0
      %2126 = vmatpush1.msra.mxu0 0.0
      %2127 = vmatprep.subr.mxu0 0.0
      %2128 = vmatpush1.msra.mxu0 0.0
      %2129 = vmatprep.subr.mxu0 0.0
      %2130 = vmatpush1.msra.mxu0 0.0
      %2131 = vmatprep.subr.mxu0 0.0
      %2132 = vmatpush1.msra.mxu0 0.0
      %2133 = vmatprep.subr.mxu0 0.0
      %2134 = vmatpush1.msra.mxu0 0.0
      %2135 = vmatprep.subr.mxu0 0.0
      %2136 = vmatpush1.msra.mxu0 0.0
      %2137 = vmatprep.subr.mxu0 0.0
      %2138 = vmatpush1.msra.mxu0 0.0
      %2139 = vmatprep.subr.mxu0 0.0
      %2140 = vmatpush1.msra.mxu0 0.0
      %2141 = vmatprep.subr.mxu0 0.0
      %2142 = vmatpush1.msra.mxu0 0.0
      %2143 = vmatprep.subr.mxu0 0.0
      %2144 = vmatpush1.msra.mxu0 0.0
      %2145 = vmatprep.subr.mxu0 0.0
      %2146 = vmatpush1.msra.mxu0 0.0
      %2147 = vmatprep.subr.mxu0 0.0
      %2148 = vmatpush1.msra.mxu0 0.0
      %2149 = vmatprep.subr.mxu0 0.0
      %2150 = vmatpush1.msra.mxu0 0.0
      %2151 = vmatprep.subr.mxu0 0.0
      %2152 = vmatpush1.msra.mxu0 0.0
      %2153 = vmatprep.subr.mxu0 0.0
      %2154 = vmatpush1.msra.mxu0 0.0
      %2155 = vmatprep.subr.mxu0 0.0
      %2156 = vmatpush1.msra.mxu0 0.0
      %2157 = vmatprep.subr.mxu0 0.0
      %2158 = vmatpush1.msra.mxu0 0.0
      %2159 = vmatprep.subr.mxu0 0.0
      %2160 = vmatpush1.msra.mxu0 0.0
      %2161 = vmatprep.subr.mxu0 0.0
      %2162 = vmatpush1.msra.mxu0 0.0
      %2163 = vmatprep.subr.mxu0 0.0
      %2164 = vmatpush1.msra.mxu0 0.0
      %2165 = vmatprep.subr.mxu0 0.0
      %2166 = vmatpush1.msra.mxu0 0.0
      %2167 = vmatprep.subr.mxu0 0.0
      %2168 = vmatpush1.msra.mxu0 0.0
      %2169 = vmatprep.subr.mxu0 0.0
      %2170 = vmatpush1.msra.mxu0 0.0
      %2171 = vmatprep.subr.mxu0 0.0
      %2172 = vmatpush1.msra.mxu0 0.0
      %2173 = vmatprep.mubr.f32.mxu0 0.0
      %2174 = vmatmul.mubr.f32.gmra.mrb[0].mxu0 %v2104
      %v2175 = vpop.f32.mrb[0].mxu0
      %v2176 = vadd.f32 %v2096, %v2175
      %v2177 = vpop.f32.mrb[0].mxu0
      %v2178 = vadd.f32 %v2096, %v2177
      %2179 = vmatprep.mubr.f32.mxu0 0.0
      %2180 = vmatmul.mubr.f32.gmra.mrb[0].mxu0 %v2107
      %v2181 = vpop.f32.mrb[0].mxu0
      %v2182 = vadd.f32 %v2101, %v2181
      %v2183 = vpop.f32.mrb[0].mxu0
      %v2184 = vadd.f32 %v2101, %v2183
      %2185 = vdwg.mxu0
      %2186 = vmatprep.subr.mxu0 0.0
      %2187 = vmatpush1.msra.mxu0 %v2083
      %2188 = vmatprep.subr.mxu0 0.0
      %2189 = vmatpush1.msra.mxu0 %v2086
      %2190 = vmatprep.subr.mxu0 0.0
      %2191 = vmatpush1.msra.mxu0 0.0
      %2192 = vmatprep.subr.mxu0 0.0
      %2193 = vmatpush1.msra.mxu0 0.0
      %2194 = vmatprep.subr.mxu0 0.0
      %2195 = vmatpush1.msra.mxu0 0.0
      %2196 = vmatprep.subr.mxu0 0.0
      %2197 = vmatpush1.msra.mxu0 0.0
      %2198 = vmatprep.subr.mxu0 0.0
      %2199 = vmatpush1.msra.mxu0 0.0
      %2200 = vmatprep.subr.mxu0 0.0
      %2201 = vmatpush1.msra.mxu0 0.0
      %2202 = vmatprep.subr.mxu0 0.0
      %2203 = vmatpush1.msra.mxu0 0.0
      %2204 = vmatprep.subr.mxu0 0.0
      %2205 = vmatpush1.msra.mxu0 0.0
      %2206 = vmatprep.subr.mxu0 0.0
      %2207 = vmatpush1.msra.mxu0 0.0
      %2208 = vmatprep.subr.mxu0 0.0
      %2209 = vmatpush1.msra.mxu0 0.0
      %2210 = vmatprep.subr.mxu0 0.0
      %2211 = vmatpush1.msra.mxu0 0.0
      %2212 = vmatprep.subr.mxu0 0.0
      %2213 = vmatpush1.msra.mxu0 0.0
      %2214 = vmatprep.subr.mxu0 0.0
      %2215 = vmatpush1.msra.mxu0 0.0
      %2216 = vmatprep.subr.mxu0 0.0
      %2217 = vmatpush1.msra.mxu0 0.0
      %2218 = vmatprep.subr.mxu0 0.0
      %2219 = vmatpush1.msra.mxu0 0.0
      %2220 = vmatprep.subr.mxu0 0.0
      %2221 = vmatpush1.msra.mxu0 0.0
      %2222 = vmatprep.subr.mxu0 0.0
      %2223 = vmatpush1.msra.mxu0 0.0
      %2224 = vmatprep.subr.mxu0 0.0
      %2225 = vmatpush1.msra.mxu0 0.0
      %2226 = vmatprep.subr.mxu0 0.0
      %2227 = vmatpush1.msra.mxu0 0.0
      %2228 = vmatprep.subr.mxu0 0.0
      %2229 = vmatpush1.msra.mxu0 0.0
      %2230 = vmatprep.subr.mxu0 0.0
      %2231 = vmatpush1.msra.mxu0 0.0
      %2232 = vmatprep.subr.mxu0 0.0
      %2233 = vmatpush1.msra.mxu0 0.0
      %2234 = vmatprep.subr.mxu0 0.0
      %2235 = vmatpush1.msra.mxu0 0.0
      %2236 = vmatprep.subr.mxu0 0.0
      %2237 = vmatpush1.msra.mxu0 0.0
      %2238 = vmatprep.subr.mxu0 0.0
      %2239 = vmatpush1.msra.mxu0 0.0
      %2240 = vmatprep.subr.mxu0 0.0
      %2241 = vmatpush1.msra.mxu0 0.0
      %2242 = vmatprep.subr.mxu0 0.0
      %2243 = vmatpush1.msra.mxu0 0.0
      %2244 = vmatprep.subr.mxu0 0.0
      %2245 = vmatpush1.msra.mxu0 0.0
      %2246 = vmatprep.subr.mxu0 0.0
      %2247 = vmatpush1.msra.mxu0 0.0
      %2248 = vmatprep.subr.mxu0 0.0
      %2249 = vmatpush1.msra.mxu0 0.0
      %2250 = vmatprep.mubr.f32.mxu0 0.0
      %2251 = vmatmul.mubr.f32.gmra.mrb[0].mxu0 %v2104
      %v2252 = vpop.f32.mrb[0].mxu0
      %v2253 = vadd.f32 %v2096, %v2252
      %v2254 = vpop.f32.mrb[0].mxu0
      %2255 = vmatprep.mubr.f32.mxu0 0.0
      %2256 = vmatmul.mubr.f32.gmra.mrb[0].mxu0 %v2107
      %v2257 = vpop.f32.mrb[0].mxu0
      %v2258 = vadd.f32 %v2101, %v2257
      %v2259 = vpop.f32.mrb[0].mxu0
      %2260 = vdwg.mxu0
      %v2261 = vsub.f32 0.0, %v2176
      %v2262 = vsub.f32 0.0, %v2178
      %v2263 = vsub.f32 0.0, %v2253
      %v2264 = vsub.f32 0.0, %v2182
      %v2265 = vsub.f32 0.0, %v2184
      %v2266 = vsub.f32 0.0, %v2258
      %v2267 = vmul.f32 %v2261, 1.442695
      %v2268 = vpow.pop %v2267
      %v2269 = vmul.f32 %v2262, 1.442695
      %v2270 = vpow.pop %v2269
      %v2271 = vmul.f32 %v2263, 1.442695
      %v2272 = vpow.pop %v2271
      %v2273 = vmul.f32 %v2264, 1.442695
      %v2274 = vpow.pop %v2273
      %v2275 = vmul.f32 %v2265, 1.442695
      %v2276 = vpow.pop %v2275
      %v2277 = vmul.f32 %v2266, 1.442695
      %v2278 = vpow.pop %v2277
      %v2279 = vadd.f32 %v2268, 1.0
      %v2280 = vadd.f32 %v2270, 1.0
      %v2281 = vadd.f32 %v2272, 1.0
      %v2282 = vadd.f32 %v2274, 1.0
      %v2283 = vadd.f32 %v2276, 1.0
      %v2284 = vadd.f32 %v2278, 1.0
      %v2285 = vrcp.pop %v2279
      %v2286 = vrcp.pop %v2280
      %v2287 = vrcp.pop %v2281
      %v2288 = vrcp.pop %v2282
      %v2289 = vrcp.pop %v2283
      %v2290 = vrcp.pop %v2284
      %v2291 = vmul.f32 %v2176, %v2285
      %v2292 = vmul.f32 %v2178, %v2286
      %v2293 = vmul.f32 %v2253, %v2287
      %v2294 = vmul.f32 %v2182, %v2288
      %v2295 = vmul.f32 %v2184, %v2289
      %v2296 = vmul.f32 %v2258, %v2290
      %s2297 = scalar_lea.vmem %s1, 160
      %v2298 = vld [vmem:[%s2297] sm:$0xff]
      %s2299 = scalar_lea.vmem %s2, 160
      %v2300 = vld [vmem:[%s2299] sm:$0xff]
      %2302 = vset.pattern.permute.xlu0 0
      %2303 = vperm.xlu0 %2302, %v2300
      %v2304 = vpop.permute.xlu0 %2303
      %v2307 = vsel %vm422, %v2298, 0
      %2309 = vmatprep.subr.mxu0 %v2292
      %2310 = vmatpush1.msra.mxu0 %v2291
      %2311 = vmatprep.subr.mxu0 %v2295
      %2312 = vmatpush1.msra.mxu0 %v2294
      %2313 = vmatprep.subr.mxu0 0.0
      %2314 = vmatpush1.msra.mxu0 0.0
      %2315 = vmatprep.subr.mxu0 0.0
      %2316 = vmatpush1.msra.mxu0 0.0
      %2317 = vmatprep.subr.mxu0 0.0
      %2318 = vmatpush1.msra.mxu0 0.0
      %2319 = vmatprep.subr.mxu0 0.0
      %2320 = vmatpush1.msra.mxu0 0.0
      %2321 = vmatprep.subr.mxu0 0.0
      %2322 = vmatpush1.msra.mxu0 0.0
      %2323 = vmatprep.subr.mxu0 0.0
      %2324 = vmatpush1.msra.mxu0 0.0
      %2325 = vmatprep.subr.mxu0 0.0
      %2326 = vmatpush1.msra.mxu0 0.0
      %2327 = vmatprep.subr.mxu0 0.0
      %2328 = vmatpush1.msra.mxu0 0.0
      %2329 = vmatprep.subr.mxu0 0.0
      %2330 = vmatpush1.msra.mxu0 0.0
      %2331 = vmatprep.subr.mxu0 0.0
      %2332 = vmatpush1.msra.mxu0 0.0
      %2333 = vmatprep.subr.mxu0 0.0
      %2334 = vmatpush1.msra.mxu0 0.0
      %2335 = vmatprep.subr.mxu0 0.0
      %2336 = vmatpush1.msra.mxu0 0.0
      %2337 = vmatprep.subr.mxu0 0.0
      %2338 = vmatpush1.msra.mxu0 0.0
      %2339 = vmatprep.subr.mxu0 0.0
      %2340 = vmatpush1.msra.mxu0 0.0
      %2341 = vmatprep.subr.mxu0 0.0
      %2342 = vmatpush1.msra.mxu0 0.0
      %2343 = vmatprep.subr.mxu0 0.0
      %2344 = vmatpush1.msra.mxu0 0.0
      %2345 = vmatprep.subr.mxu0 0.0
      %2346 = vmatpush1.msra.mxu0 0.0
      %2347 = vmatprep.subr.mxu0 0.0
      %2348 = vmatpush1.msra.mxu0 0.0
      %2349 = vmatprep.subr.mxu0 0.0
      %2350 = vmatpush1.msra.mxu0 0.0
      %2351 = vmatprep.subr.mxu0 0.0
      %2352 = vmatpush1.msra.mxu0 0.0
      %2353 = vmatprep.subr.mxu0 0.0
      %2354 = vmatpush1.msra.mxu0 0.0
      %2355 = vmatprep.subr.mxu0 0.0
      %2356 = vmatpush1.msra.mxu0 0.0
      %2357 = vmatprep.subr.mxu0 0.0
      %2358 = vmatpush1.msra.mxu0 0.0
      %2359 = vmatprep.subr.mxu0 0.0
      %2360 = vmatpush1.msra.mxu0 0.0
      %2361 = vmatprep.subr.mxu0 0.0
      %2362 = vmatpush1.msra.mxu0 0.0
      %2363 = vmatprep.subr.mxu0 0.0
      %2364 = vmatpush1.msra.mxu0 0.0
      %2365 = vmatprep.subr.mxu0 0.0
      %2366 = vmatpush1.msra.mxu0 0.0
      %2367 = vmatprep.subr.mxu0 0.0
      %2368 = vmatpush1.msra.mxu0 0.0
      %2369 = vmatprep.subr.mxu0 0.0
      %2370 = vmatpush1.msra.mxu0 0.0
      %2371 = vmatprep.subr.mxu0 0.0
      %2372 = vmatpush1.msra.mxu0 0.0
      %2373 = vmatprep.mubr.f32.mxu0 0.0
      %2374 = vmatmul.mubr.f32.gmra.mrb[0].mxu0 %v2307
      %v2375 = vpop.f32.mrb[0].mxu0
      %v2376 = vadd.f32 %v2304, %v2375
      %v2377 = vpop.f32.mrb[0].mxu0
      %v2378 = vadd.f32 %v2304, %v2377
      %2379 = vdwg.mxu0
      %2380 = vmatprep.subr.mxu0 0.0
      %2381 = vmatpush1.msra.mxu0 %v2293
      %2382 = vmatprep.subr.mxu0 0.0
      %2383 = vmatpush1.msra.mxu0 %v2296
      %2384 = vmatprep.subr.mxu0 0.0
      %2385 = vmatpush1.msra.mxu0 0.0
      %2386 = vmatprep.subr.mxu0 0.0
      %2387 = vmatpush1.msra.mxu0 0.0
      %2388 = vmatprep.subr.mxu0 0.0
      %2389 = vmatpush1.msra.mxu0 0.0
      %2390 = vmatprep.subr.mxu0 0.0
      %2391 = vmatpush1.msra.mxu0 0.0
      %2392 = vmatprep.subr.mxu0 0.0
      %2393 = vmatpush1.msra.mxu0 0.0
      %2394 = vmatprep.subr.mxu0 0.0
      %2395 = vmatpush1.msra.mxu0 0.0
      %2396 = vmatprep.subr.mxu0 0.0
      %2397 = vmatpush1.msra.mxu0 0.0
      %2398 = vmatprep.subr.mxu0 0.0
      %2399 = vmatpush1.msra.mxu0 0.0
      %2400 = vmatprep.subr.mxu0 0.0
      %2401 = vmatpush1.msra.mxu0 0.0
      %2402 = vmatprep.subr.mxu0 0.0
      %2403 = vmatpush1.msra.mxu0 0.0
      %2404 = vmatprep.subr.mxu0 0.0
      %2405 = vmatpush1.msra.mxu0 0.0
      %2406 = vmatprep.subr.mxu0 0.0
      %2407 = vmatpush1.msra.mxu0 0.0
      %2408 = vmatprep.subr.mxu0 0.0
      %2409 = vmatpush1.msra.mxu0 0.0
      %2410 = vmatprep.subr.mxu0 0.0
      %2411 = vmatpush1.msra.mxu0 0.0
      %2412 = vmatprep.subr.mxu0 0.0
      %2413 = vmatpush1.msra.mxu0 0.0
      %2414 = vmatprep.subr.mxu0 0.0
      %2415 = vmatpush1.msra.mxu0 0.0
      %2416 = vmatprep.subr.mxu0 0.0
      %2417 = vmatpush1.msra.mxu0 0.0
      %2418 = vmatprep.subr.mxu0 0.0
      %2419 = vmatpush1.msra.mxu0 0.0
      %2420 = vmatprep.subr.mxu0 0.0
      %2421 = vmatpush1.msra.mxu0 0.0
      %2422 = vmatprep.subr.mxu0 0.0
      %2423 = vmatpush1.msra.mxu0 0.0
      %2424 = vmatprep.subr.mxu0 0.0
      %2425 = vmatpush1.msra.mxu0 0.0
      %2426 = vmatprep.subr.mxu0 0.0
      %2427 = vmatpush1.msra.mxu0 0.0
      %2428 = vmatprep.subr.mxu0 0.0
      %2429 = vmatpush1.msra.mxu0 0.0
      %2430 = vmatprep.subr.mxu0 0.0
      %2431 = vmatpush1.msra.mxu0 0.0
      %2432 = vmatprep.subr.mxu0 0.0
      %2433 = vmatpush1.msra.mxu0 0.0
      %2434 = vmatprep.subr.mxu0 0.0
      %2435 = vmatpush1.msra.mxu0 0.0
      %2436 = vmatprep.subr.mxu0 0.0
      %2437 = vmatpush1.msra.mxu0 0.0
      %2438 = vmatprep.subr.mxu0 0.0
      %2439 = vmatpush1.msra.mxu0 0.0
      %2440 = vmatprep.subr.mxu0 0.0
      %2441 = vmatpush1.msra.mxu0 0.0
      %2442 = vmatprep.subr.mxu0 0.0
      %2443 = vmatpush1.msra.mxu0 0.0
      %2444 = vmatprep.mubr.f32.mxu0 0.0
      %2445 = vmatmul.mubr.f32.gmra.mrb[0].mxu0 %v2307
      %v2446 = vpop.f32.mrb[0].mxu0
      %v2447 = vadd.f32 %v2304, %v2446
      %v2448 = vpop.f32.mrb[0].mxu0
      %2449 = vdwg.mxu0
      %v2453 = vcombine.low %v2376, %v2378
      %v2455 = vunpack.c.l.s4 1966171168
      %v2456 = vunpack.c.0.s8 %v2455
      %v2457 = vlaneseq
      %v2458 = vshrl.u32 %v2457, 7
      %v2459 = vsub.s32 %v2456, %v2458
      %v2460 = vrot.slane %v2453, %v2459
      %v2462 = vunpack.c.l.s4 1966171168
      %v2463 = vunpack.c.0.s8 %v2462
      %v2464 = vlaneseq
      %v2465 = vshrl.u32 %v2464, 7
      %v2466 = vsub.s32 %v2463, %v2465
      %v2467 = vrot.slane %v2447, %v2466
      %v2468 = vcombine.low %v2460, %v2467
      %v2470 = vunpack.c.l.s4 1966171168
      %v2471 = vunpack.c.0.s8 %v2470
      %v2472 = vlaneseq
      %v2473 = vshrl.u32 %v2472, 7
      %v2474 = vsub.s32 %v2471, %v2473
      %v2475 = vrot.slane %v2468, %v2474
      %v2477 = vlaneseq
      %vm2478 = vcmp.ge.s32.totalorder %v2477, 0
      %vm2479 = vcmp.lt.s32.totalorder %v2477, 384
      %vm2480 = vmand %vm2478, %vm2479
      %2481 = vst.msk [vmem:[%s170] sm:$0x7] %vm2480, %v2475
      %s2482 = smul.u32 3, %s14
      %p2483 = scmp.lt.s32.totalorder %s2482, 5
      %s2484 = scalar_select %p2483, %s2482, 5
      %s2485 = scalar_lea.vmem %s3, %s2484
      // Predicated region
      $region33: #{pinn_t_forward.1} parent=31 // pred_check
        %p2486 = pneg %p100
      $region34: #{pinn_t_forward.1} parent=31 // pred_check_branch
        %2488 = sbr.rel (%p2486) target = $region36
      $region35: #{pinn_t_forward.1} parent=31 // pred_region
        %s2489 = smul.u32 3, %s14
      $region36: #{pinn_t_forward.1} parent=31 // pred_fallthru
        _
    $region32: #{pinn_t_forward.1} parent=5 // pred_fallthru
      _
    %p2490 = scmp.le.s32.totalorder 2, %s9
    // Predicated region
    $region37: #{pinn_t_forward.1} parent=5 // pred_check
      %p2491 = pneg %p2490
    $region38: #{pinn_t_forward.1} parent=5 // pred_check_branch
      %2493 = sbr.rel (%p2491) target = $region40
    $region39: #{pinn_t_forward.1} parent=5 // pred_region
      %s2494 = ssub.s32 %s9, 2
      // Predicated region
      $region41: #{pinn_t_forward.1} parent=39 // pred_check
        %p2495 = pneg %p106
      $region42: #{pinn_t_forward.1} parent=39 // pred_check_branch
        %2497 = sbr.rel (%p2495) target = $region44
      $region43: #{pinn_t_forward.1} parent=39 // pred_region
        %s2498 = smul.u32 3, %s15
        %p2499 = scmp.lt.s32.totalorder %s2498, 5
        %s2500 = scalar_select %p2499, %s2498, 5
        %s2501 = scalar_lea.vmem %s3, %s2500
      $region44: #{pinn_t_forward.1} parent=39 // pred_fallthru
        _
    $region40: #{pinn_t_forward.1} parent=5 // pred_fallthru
      _
  $region6: #{pinn_t_forward.1} parent=0 // loop_footer
    %s13 = sadd.s32 1, %s9
  $region7: #{pinn_t_forward.1} parent=0 // loop_footer_branch
    %8 = sbr.rel target = $region3
  $region8: #{pinn_t_forward.1} parent=0 // loop_exit
    _

</llo_original>
